<compile_context>
chip_gen: v6e
topology: v6e:2x2x1
jax: 0.10.0
libtpu: 0.0.40
codegen_flags: <defaults>
</compile_context>

<pallas_src>
import functools

import jax
import jax.numpy as jnp
from jax import lax
from jax.experimental import pallas as pl
from jax.experimental.pallas import tpu as pltpu

# "hp" hyperparameters (small, synthetic)
N_MELS = 32     # hp.n_mels
HIDDEN = 32     # hp.hidden
NUM_LAYER = 2   # hp.num_layer
PROJ = 16       # hp.proj
NORM_EPS = 1e-12


def _speech_embed_kernel(num_layers, hidden, unroll, *refs):
    """refs = x_ref, (w_ih, w_hh, b) * num_layers, wp, bp, out_ref."""
    x_ref = refs[0]
    layer_refs = refs[1:1 + 3 * num_layers]
    wp_ref = refs[1 + 3 * num_layers]
    bp_ref = refs[2 + 3 * num_layers]
    out_ref = refs[3 + 3 * num_layers]

    Bt, T, F = x_ref.shape
    H = hidden

    # ---- hoisted, loop-invariant loads (weights stay resident in vregs/VMEM) ----
    w_ih = [layer_refs[3 * l][...] for l in range(num_layers)]      # (in, 4H) bf16
    w_hh = [layer_refs[3 * l + 1][...] for l in range(num_layers)]  # (H, 4H)  bf16
    bs = [layer_refs[3 * l + 2][...] for l in range(num_layers)]    # (1, 4H)  f32
    wp = wp_ref[...]                                                # (H, P)   bf16
    bp = bp_ref[...]                                                # (1, P)   f32

    # Lane mask selecting the "g" gate (lanes 2H..3H). Hoisted: JAX does not CSE
    # broadcast_in_dim, so building it inside the loop would replicate it T times.
    lane = lax.broadcasted_iota(jnp.int32, (Bt, 4 * H), 1)
    is_g = (lane >= 2 * H) & (lane < 3 * H)

    def lstm_cell(x_part, h, c, whh, b):
        # x_part = x_t @ W_ih (f32 acc, carry-independent).  The only matmul on
        # the serial dependence chain is the small (Bt, H) x (H, 4H) one.
        gates = x_part + jnp.dot(h, whh, preferred_element_type=jnp.float32) + b
        # One full-width EUP pass: sigmoid everywhere, tanh(g) = 2*sigmoid(2g) - 1.
        z = jnp.where(is_g, gates * 2.0, gates)
        s = jax.nn.sigmoid(z)
        act = jnp.where(is_g, 2.0 * s - 1.0, s)
        i = act[:, 0 * H:1 * H]
        f = act[:, 1 * H:2 * H]
        g = act[:, 2 * H:3 * H]
        o = act[:, 3 * H:4 * H]
        c_new = f * c + i * g
        h_new = (o * jnp.tanh(c_new)).astype(jnp.bfloat16)  # h only feeds MXU
        return h_new, c_new

    def step(t, carry):
        hs, cs = carry
        inp = x_ref[:, t, :]                 # (Bt, F) bf16 slice of the slab
        new_hs, new_cs = [], []
        for l in range(num_layers):
            x_part = jnp.dot(inp, w_ih[l], preferred_element_type=jnp.float32)
            h_new, c_new = lstm_cell(x_part, hs[l], cs[l], w_hh[l], bs[l])
            new_hs.append(h_new)
            new_cs.append(c_new)
            inp = h_new
        return tuple(new_hs), tuple(new_cs)

    h0 = jnp.zeros((Bt, H), jnp.bfloat16)    # PyTorch LSTM default zero state
    c0 = jnp.zeros((Bt, H), jnp.float32)
    carry = (tuple(h0 for _ in range(num_layers)),
             tuple(c0 for _ in range(num_layers)))

    # h/c live in the loop carry (registers); fully unroll short sequences so the
    # scheduler can interleave layer-1 of step t with layer-0 of step t+1 and
    # hoist all carry-independent x_t @ W_ih pushes ahead of the serial chain.
    if unroll >= T:
        for t in range(T):
            carry = step(t, carry)
    else:
        carry = lax.fori_loop(0, T, step, carry, unroll=unroll)

    hs, _ = carry
    last = hs[num_layers - 1]                                     # (Bt, H) bf16
    proj = jnp.dot(last, wp, preferred_element_type=jnp.float32) + bp  # (Bt, P)
    sq = jnp.sum(proj * proj, axis=1, keepdims=True)
    out_ref[...] = proj * lax.rsqrt(sq + NORM_EPS)                # L2 normalize


def speech_embed_forward(x, params, *, unroll=None):
    """x: (B, T, n_mels) -> (B, PROJ) L2-normalized embeddings."""
    B, T, F = x.shape
    assert F == N_MELS
    # bf16 matmul operands (halves x HBM/VMEM traffic, doubles MXU rate);
    # all gate math / accumulation stays f32 inside the kernel.
    x = x.astype(jnp.bfloat16)

    # Batch tile: whole batch for small B; 128-row tiles otherwise (fills the
    # MXU, shards across v7x's two TensorCores via the parallel grid axis, and
    # keeps the double-buffered x block comfortably inside v7x's 64 MiB VMEM).
    b_tile = 128 if (B % 128 == 0) else B
    grid = (B // b_tile,)

    if unroll is None:
        unroll = T if T <= 32 else 4

    inputs = [x]
    in_specs = [pl.BlockSpec((b_tile, T, F), lambda b: (b, 0, 0))]
    for l in range(NUM_LAYER):
        inputs += [params[f"wih{l}"], params[f"whh{l}"], params[f"b{l}"]]
        in_specs += [
            pl.BlockSpec(params[f"wih{l}"].shape, lambda b: (0, 0)),
            pl.BlockSpec(params[f"whh{l}"].shape, lambda b: (0, 0)),
            pl.BlockSpec(params[f"b{l}"].shape, lambda b: (0, 0)),
        ]
    inputs += [params["wp"], params["bp"]]
    in_specs += [
        pl.BlockSpec(params["wp"].shape, lambda b: (0, 0)),
        pl.BlockSpec(params["bp"].shape, lambda b: (0, 0)),
    ]
    out_specs = pl.BlockSpec((b_tile, PROJ), lambda b: (b, 0))

    # Advisory cost estimate so XLA schedules surrounding ops sensibly.
    flops = (2 * B * T * sum(((N_MELS if l == 0 else HIDDEN) + HIDDEN) * 4 * HIDDEN
                             for l in range(NUM_LAYER))
             + 2 * B * HIDDEN * PROJ)
    transcendentals = B * T * NUM_LAYER * (4 * HIDDEN + HIDDEN) + B
    bytes_accessed = (x.size * x.dtype.itemsize
                      + sum(int(v.size) * v.dtype.itemsize for v in params.values())
                      + B * PROJ * 4)

    kernel = functools.partial(_speech_embed_kernel, NUM_LAYER, HIDDEN, unroll)

    return pl.pallas_call(
        kernel,
        out_shape=jax.ShapeDtypeStruct((B, PROJ), jnp.float32),
        grid=grid,
        in_specs=in_specs,
        out_specs=out_specs,
        compiler_params=pltpu.CompilerParams(
            dimension_semantics=("parallel",),
            vmem_limit_bytes=32 * 1024 * 1024,
        ),
        cost_estimate=pl.CostEstimate(
            flops=flops,
            transcendentals=transcendentals,
            bytes_accessed=bytes_accessed,
        ),
    )(*inputs)


def init_params(key):
    """Xavier-normal LSTM weights, zero LSTM biases (b_ih + b_hh folded into one
    term), PyTorch-default uniform Linear init. LSTM weights are pre-transposed
    to (in, 4H) / (H, 4H) so each step is two small MXU pushes per layer, with
    only the h @ W_hh one on the serial dependence chain."""
    params = {}
    for l in range(NUM_LAYER):
        in_dim = N_MELS if l == 0 else HIDDEN
        key, k1, k2 = jax.random.split(key, 3)
        std_ih = (2.0 / (4 * HIDDEN + in_dim)) ** 0.5   # xavier_normal on (4H, in)
        std_hh = (2.0 / (4 * HIDDEN + HIDDEN)) ** 0.5   # xavier_normal on (4H, H)
        wih = jax.random.normal(k1, (4 * HIDDEN, in_dim), jnp.float32) * std_ih
        whh = jax.random.normal(k2, (4 * HIDDEN, HIDDEN), jnp.float32) * std_hh
        params[f"wih{l}"] = wih.T.astype(jnp.bfloat16)               # (in, 4H)
        params[f"whh{l}"] = whh.T.astype(jnp.bfloat16)               # (H, 4H)
        params[f"b{l}"] = jnp.zeros((1, 4 * HIDDEN), jnp.float32)    # b_ih + b_hh = 0
    key, k3, k4 = jax.random.split(key, 3)
    bound = 1.0 / HIDDEN ** 0.5                                      # nn.Linear default
    wp = jax.random.uniform(k3, (PROJ, HIDDEN), jnp.float32, -bound, bound)
    bp = jax.random.uniform(k4, (1, PROJ), jnp.float32, -bound, bound)
    params["wp"] = wp.T.astype(jnp.bfloat16)                         # (H, P)
    params["bp"] = bp                                                # (1, P)
    return params


if __name__ == "__main__":
    key = jax.random.PRNGKey(0)
    kp, kx = jax.random.split(key)
    params = init_params(kp)

    B, T = 2, 8
    x = jax.random.normal(kx, (B, T, N_MELS), jnp.float32)  # (batch, seq, n_mels)

    out = speech_embed_forward(x, params)
    out = jax.block_until_ready(out)
    assert out.shape == (B, PROJ)
    assert bool(jnp.all(jnp.isfinite(out)))
    print("KERNEL_OK")
</pallas_src>

<mosaic_0001>
module attributes {stable_mosaic.version = 11 : i64} {
  func.func @_speech_embed_kernel(%arg0: i32, %arg1: memref<2x8x32xbf16, #tpu.memory_space<vmem>>, %arg2: memref<32x128xbf16, #tpu.memory_space<vmem>>, %arg3: memref<32x128xbf16, #tpu.memory_space<vmem>>, %arg4: memref<1x128xf32, #tpu.memory_space<vmem>>, %arg5: memref<32x128xbf16, #tpu.memory_space<vmem>>, %arg6: memref<32x128xbf16, #tpu.memory_space<vmem>>, %arg7: memref<1x128xf32, #tpu.memory_space<vmem>>, %arg8: memref<32x16xbf16, #tpu.memory_space<vmem>>, %arg9: memref<1x16xf32, #tpu.memory_space<vmem>>, %arg10: memref<2x16xf32, #tpu.memory_space<vmem>>) attributes {dimension_semantics = [#tpu.dimension_semantics<parallel>], iteration_bounds = array<i64: 1>, scalar_prefetch = 0 : i64, scratch_operands = 0 : i64, tpu.core_type = #tpu.core_type<tc>, window_params = [{transform_indices = @transform_0, window_bounds = array<i64: 2, 8, 32>}, {pipeline_mode = #tpu.pipeline_mode<synchronous>, transform_indices = @transform_1, window_bounds = array<i64: 32, 128>}, {pipeline_mode = #tpu.pipeline_mode<synchronous>, transform_indices = @transform_2, window_bounds = array<i64: 32, 128>}, {pipeline_mode = #tpu.pipeline_mode<synchronous>, transform_indices = @transform_3, window_bounds = array<i64: 1, 128>}, {pipeline_mode = #tpu.pipeline_mode<synchronous>, transform_indices = @transform_4, window_bounds = array<i64: 32, 128>}, {pipeline_mode = #tpu.pipeline_mode<synchronous>, transform_indices = @transform_5, window_bounds = array<i64: 32, 128>}, {pipeline_mode = #tpu.pipeline_mode<synchronous>, transform_indices = @transform_6, window_bounds = array<i64: 1, 128>}, {pipeline_mode = #tpu.pipeline_mode<synchronous>, transform_indices = @transform_7, window_bounds = array<i64: 32, 16>}, {pipeline_mode = #tpu.pipeline_mode<synchronous>, transform_indices = @transform_8, window_bounds = array<i64: 1, 16>}, {transform_indices = @transform_9, window_bounds = array<i64: 2, 16>}]} {
    %c0 = arith.constant 0 : index
    %c0_0 = arith.constant 0 : index
    %0 = vector.load %arg2[%c0, %c0_0] : memref<32x128xbf16, #tpu.memory_space<vmem>>, vector<32x128xbf16>
    %c0_1 = arith.constant 0 : index
    %c0_2 = arith.constant 0 : index
    %1 = vector.load %arg5[%c0_1, %c0_2] : memref<32x128xbf16, #tpu.memory_space<vmem>>, vector<32x128xbf16>
    %c0_3 = arith.constant 0 : index
    %c0_4 = arith.constant 0 : index
    %2 = vector.load %arg3[%c0_3, %c0_4] : memref<32x128xbf16, #tpu.memory_space<vmem>>, vector<32x128xbf16>
    %c0_5 = arith.constant 0 : index
    %c0_6 = arith.constant 0 : index
    %3 = vector.load %arg6[%c0_5, %c0_6] : memref<32x128xbf16, #tpu.memory_space<vmem>>, vector<32x128xbf16>
    %c0_7 = arith.constant 0 : index
    %c0_8 = arith.constant 0 : index
    %4 = vector.load %arg4[%c0_7, %c0_8] : memref<1x128xf32, #tpu.memory_space<vmem>>, vector<1x128xf32>
    %c0_9 = arith.constant 0 : index
    %c0_10 = arith.constant 0 : index
    %5 = vector.load %arg7[%c0_9, %c0_10] : memref<1x128xf32, #tpu.memory_space<vmem>>, vector<1x128xf32>
    %c0_11 = arith.constant 0 : index
    %c0_12 = arith.constant 0 : index
    %6 = vector.load %arg8[%c0_11, %c0_12] : memref<32x16xbf16, #tpu.memory_space<vmem>>, vector<32x16xbf16>
    %c0_13 = arith.constant 0 : index
    %c0_14 = arith.constant 0 : index
    %7 = vector.load %arg9[%c0_13, %c0_14] : memref<1x16xf32, #tpu.memory_space<vmem>>, vector<1x16xf32>
    %8 = tpu.iota {dimensions = array<i32: 1>} : vector<2x128xi32>
    %c64_i32 = arith.constant 64 : i32
    %9 = vector.broadcast %c64_i32 : i32 to vector<2x128xi32>
    %10 = arith.cmpi sge, %8, %9 : vector<2x128xi32>
    %c96_i32 = arith.constant 96 : i32
    %11 = vector.broadcast %c96_i32 : i32 to vector<2x128xi32>
    %12 = arith.cmpi slt, %8, %11 : vector<2x128xi32>
    %13 = arith.andi %10, %12 : vector<2x128xi1>
    %cst = arith.constant 0.000000e+00 : bf16
    %14 = vector.broadcast %cst : bf16 to vector<2x32xbf16>
    %cst_15 = arith.constant 0.000000e+00 : f32
    %15 = vector.broadcast %cst_15 : f32 to vector<2x32xf32>
    %c0_16 = arith.constant 0 : index
    %c0_17 = arith.constant 0 : index
    %c0_18 = arith.constant 0 : index
    %16 = vector.load %arg1[%c0_16, %c0_17, %c0_18] : memref<2x8x32xbf16, #tpu.memory_space<vmem>>, vector<2x1x32xbf16>
    %17 = vector.shape_cast %16 : vector<2x1x32xbf16> to vector<2x32xbf16>
    %cst_19 = arith.constant dense<0.000000e+00> : vector<2x128xf32>
    %18 = tpu.matmul %17, %0, %cst_19 {dimension_numbers = #tpu.dot_dimension_numbers<[1], [0], [0], [1], [0, 0, 1, 1], [], []>} : vector<2x32xbf16>, vector<32x128xbf16>, vector<2x128xf32> -> vector<2x128xf32>
    %cst_20 = arith.constant dense<0.000000e+00> : vector<2x128xf32>
    %19 = tpu.matmul %14, %2, %cst_20 {dimension_numbers = #tpu.dot_dimension_numbers<[1], [0], [0], [1], [0, 0, 1, 1], [], []>} : vector<2x32xbf16>, vector<32x128xbf16>, vector<2x128xf32> -> vector<2x128xf32>
    %20 = arith.addf %18, %19 : vector<2x128xf32>
    %21 = vector.broadcast %4 : vector<1x128xf32> to vector<2x128xf32>
    %22 = arith.addf %20, %21 : vector<2x128xf32>
    %cst_21 = arith.constant 2.000000e+00 : f32
    %23 = vector.broadcast %cst_21 : f32 to vector<2x128xf32>
    %24 = arith.mulf %22, %23 : vector<2x128xf32>
    %25 = arith.select %13, %24, %22 : vector<2x128xi1>, vector<2x128xf32>
    %26 = arith.negf %25 : vector<2x128xf32>
    %27 = math.exp %26 : vector<2x128xf32>
    %cst_22 = arith.constant 1.000000e+00 : f32
    %28 = vector.broadcast %cst_22 : f32 to vector<2x128xf32>
    %29 = arith.addf %28, %27 : vector<2x128xf32>
    %30 = arith.divf %28, %29 : vector<2x128xf32>
    %cst_23 = arith.constant 2.000000e+00 : f32
    %31 = vector.broadcast %cst_23 : f32 to vector<2x128xf32>
    %32 = arith.mulf %31, %30 : vector<2x128xf32>
    %cst_24 = arith.constant 1.000000e+00 : f32
    %33 = vector.broadcast %cst_24 : f32 to vector<2x128xf32>
    %34 = arith.subf %32, %33 : vector<2x128xf32>
    %35 = arith.select %13, %34, %30 : vector<2x128xi1>, vector<2x128xf32>
    %36 = vector.extract_strided_slice %35 {offsets = [0, 0], sizes = [2, 32], strides = [1, 1]} : vector<2x128xf32> to vector<2x32xf32>
    %37 = vector.extract_strided_slice %35 {offsets = [0, 32], sizes = [2, 32], strides = [1, 1]} : vector<2x128xf32> to vector<2x32xf32>
    %38 = vector.extract_strided_slice %35 {offsets = [0, 64], sizes = [2, 32], strides = [1, 1]} : vector<2x128xf32> to vector<2x32xf32>
    %39 = vector.extract_strided_slice %35 {offsets = [0, 96], sizes = [2, 32], strides = [1, 1]} : vector<2x128xf32> to vector<2x32xf32>
    %40 = arith.mulf %37, %15 : vector<2x32xf32>
    %41 = arith.mulf %36, %38 : vector<2x32xf32>
    %42 = arith.addf %40, %41 : vector<2x32xf32>
    %43 = math.tanh %42 : vector<2x32xf32>
    %44 = arith.mulf %39, %43 : vector<2x32xf32>
    %45 = arith.truncf %44 : vector<2x32xf32> to vector<2x32xbf16>
    %cst_25 = arith.constant dense<0.000000e+00> : vector<2x128xf32>
    %46 = tpu.matmul %45, %1, %cst_25 {dimension_numbers = #tpu.dot_dimension_numbers<[1], [0], [0], [1], [0, 0, 1, 1], [], []>} : vector<2x32xbf16>, vector<32x128xbf16>, vector<2x128xf32> -> vector<2x128xf32>
    %cst_26 = arith.constant dense<0.000000e+00> : vector<2x128xf32>
    %47 = tpu.matmul %14, %3, %cst_26 {dimension_numbers = #tpu.dot_dimension_numbers<[1], [0], [0], [1], [0, 0, 1, 1], [], []>} : vector<2x32xbf16>, vector<32x128xbf16>, vector<2x128xf32> -> vector<2x128xf32>
    %48 = arith.addf %46, %47 : vector<2x128xf32>
    %49 = vector.broadcast %5 : vector<1x128xf32> to vector<2x128xf32>
    %50 = arith.addf %48, %49 : vector<2x128xf32>
    %cst_27 = arith.constant 2.000000e+00 : f32
    %51 = vector.broadcast %cst_27 : f32 to vector<2x128xf32>
    %52 = arith.mulf %50, %51 : vector<2x128xf32>
    %53 = arith.select %13, %52, %50 : vector<2x128xi1>, vector<2x128xf32>
    %54 = arith.negf %53 : vector<2x128xf32>
    %55 = math.exp %54 : vector<2x128xf32>
    %cst_28 = arith.constant 1.000000e+00 : f32
    %56 = vector.broadcast %cst_28 : f32 to vector<2x128xf32>
    %57 = arith.addf %56, %55 : vector<2x128xf32>
    %58 = arith.divf %56, %57 : vector<2x128xf32>
    %cst_29 = arith.constant 2.000000e+00 : f32
    %59 = vector.broadcast %cst_29 : f32 to vector<2x128xf32>
    %60 = arith.mulf %59, %58 : vector<2x128xf32>
    %cst_30 = arith.constant 1.000000e+00 : f32
    %61 = vector.broadcast %cst_30 : f32 to vector<2x128xf32>
    %62 = arith.subf %60, %61 : vector<2x128xf32>
    %63 = arith.select %13, %62, %58 : vector<2x128xi1>, vector<2x128xf32>
    %64 = vector.extract_strided_slice %63 {offsets = [0, 0], sizes = [2, 32], strides = [1, 1]} : vector<2x128xf32> to vector<2x32xf32>
    %65 = vector.extract_strided_slice %63 {offsets = [0, 32], sizes = [2, 32], strides = [1, 1]} : vector<2x128xf32> to vector<2x32xf32>
    %66 = vector.extract_strided_slice %63 {offsets = [0, 64], sizes = [2, 32], strides = [1, 1]} : vector<2x128xf32> to vector<2x32xf32>
    %67 = vector.extract_strided_slice %63 {offsets = [0, 96], sizes = [2, 32], strides = [1, 1]} : vector<2x128xf32> to vector<2x32xf32>
    %68 = arith.mulf %65, %15 : vector<2x32xf32>
    %69 = arith.mulf %64, %66 : vector<2x32xf32>
    %70 = arith.addf %68, %69 : vector<2x32xf32>
    %71 = math.tanh %70 : vector<2x32xf32>
    %72 = arith.mulf %67, %71 : vector<2x32xf32>
    %73 = arith.truncf %72 : vector<2x32xf32> to vector<2x32xbf16>
    %c0_31 = arith.constant 0 : index
    %c1 = arith.constant 1 : index
    %c0_32 = arith.constant 0 : index
    %74 = vector.load %arg1[%c0_31, %c1, %c0_32] : memref<2x8x32xbf16, #tpu.memory_space<vmem>>, vector<2x1x32xbf16>
    %75 = vector.shape_cast %74 : vector<2x1x32xbf16> to vector<2x32xbf16>
    %cst_33 = arith.constant dense<0.000000e+00> : vector<2x128xf32>
    %76 = tpu.matmul %75, %0, %cst_33 {dimension_numbers = #tpu.dot_dimension_numbers<[1], [0], [0], [1], [0, 0, 1, 1], [], []>} : vector<2x32xbf16>, vector<32x128xbf16>, vector<2x128xf32> -> vector<2x128xf32>
    %cst_34 = arith.constant dense<0.000000e+00> : vector<2x128xf32>
    %77 = tpu.matmul %45, %2, %cst_34 {dimension_numbers = #tpu.dot_dimension_numbers<[1], [0], [0], [1], [0, 0, 1, 1], [], []>} : vector<2x32xbf16>, vector<32x128xbf16>, vector<2x128xf32> -> vector<2x128xf32>
    %78 = arith.addf %76, %77 : vector<2x128xf32>
    %79 = vector.broadcast %4 : vector<1x128xf32> to vector<2x128xf32>
    %80 = arith.addf %78, %79 : vector<2x128xf32>
    %cst_35 = arith.constant 2.000000e+00 : f32
    %81 = vector.broadcast %cst_35 : f32 to vector<2x128xf32>
    %82 = arith.mulf %80, %81 : vector<2x128xf32>
    %83 = arith.select %13, %82, %80 : vector<2x128xi1>, vector<2x128xf32>
    %84 = arith.negf %83 : vector<2x128xf32>
    %85 = math.exp %84 : vector<2x128xf32>
    %cst_36 = arith.constant 1.000000e+00 : f32
    %86 = vector.broadcast %cst_36 : f32 to vector<2x128xf32>
    %87 = arith.addf %86, %85 : vector<2x128xf32>
    %88 = arith.divf %86, %87 : vector<2x128xf32>
    %cst_37 = arith.constant 2.000000e+00 : f32
    %89 = vector.broadcast %cst_37 : f32 to vector<2x128xf32>
    %90 = arith.mulf %89, %88 : vector<2x128xf32>
    %cst_38 = arith.constant 1.000000e+00 : f32
    %91 = vector.broadcast %cst_38 : f32 to vector<2x128xf32>
    %92 = arith.subf %90, %91 : vector<2x128xf32>
    %93 = arith.select %13, %92, %88 : vector<2x128xi1>, vector<2x128xf32>
    %94 = vector.extract_strided_slice %93 {offsets = [0, 0], sizes = [2, 32], strides = [1, 1]} : vector<2x128xf32> to vector<2x32xf32>
    %95 = vector.extract_strided_slice %93 {offsets = [0, 32], sizes = [2, 32], strides = [1, 1]} : vector<2x128xf32> to vector<2x32xf32>
    %96 = vector.extract_strided_slice %93 {offsets = [0, 64], sizes = [2, 32], strides = [1, 1]} : vector<2x128xf32> to vector<2x32xf32>
    %97 = vector.extract_strided_slice %93 {offsets = [0, 96], sizes = [2, 32], strides = [1, 1]} : vector<2x128xf32> to vector<2x32xf32>
    %98 = arith.mulf %95, %42 : vector<2x32xf32>
    %99 = arith.mulf %94, %96 : vector<2x32xf32>
    %100 = arith.addf %98, %99 : vector<2x32xf32>
    %101 = math.tanh %100 : vector<2x32xf32>
    %102 = arith.mulf %97, %101 : vector<2x32xf32>
    %103 = arith.truncf %102 : vector<2x32xf32> to vector<2x32xbf16>
    %cst_39 = arith.constant dense<0.000000e+00> : vector<2x128xf32>
    %104 = tpu.matmul %103, %1, %cst_39 {dimension_numbers = #tpu.dot_dimension_numbers<[1], [0], [0], [1], [0, 0, 1, 1], [], []>} : vector<2x32xbf16>, vector<32x128xbf16>, vector<2x128xf32> -> vector<2x128xf32>
    %cst_40 = arith.constant dense<0.000000e+00> : vector<2x128xf32>
    %105 = tpu.matmul %73, %3, %cst_40 {dimension_numbers = #tpu.dot_dimension_numbers<[1], [0], [0], [1], [0, 0, 1, 1], [], []>} : vector<2x32xbf16>, vector<32x128xbf16>, vector<2x128xf32> -> vector<2x128xf32>
    %106 = arith.addf %104, %105 : vector<2x128xf32>
    %107 = vector.broadcast %5 : vector<1x128xf32> to vector<2x128xf32>
    %108 = arith.addf %106, %107 : vector<2x128xf32>
    %cst_41 = arith.constant 2.000000e+00 : f32
    %109 = vector.broadcast %cst_41 : f32 to vector<2x128xf32>
    %110 = arith.mulf %108, %109 : vector<2x128xf32>
    %111 = arith.select %13, %110, %108 : vector<2x128xi1>, vector<2x128xf32>
    %112 = arith.negf %111 : vector<2x128xf32>
    %113 = math.exp %112 : vector<2x128xf32>
    %cst_42 = arith.constant 1.000000e+00 : f32
    %114 = vector.broadcast %cst_42 : f32 to vector<2x128xf32>
    %115 = arith.addf %114, %113 : vector<2x128xf32>
    %116 = arith.divf %114, %115 : vector<2x128xf32>
    %cst_43 = arith.constant 2.000000e+00 : f32
    %117 = vector.broadcast %cst_43 : f32 to vector<2x128xf32>
    %118 = arith.mulf %117, %116 : vector<2x128xf32>
    %cst_44 = arith.constant 1.000000e+00 : f32
    %119 = vector.broadcast %cst_44 : f32 to vector<2x128xf32>
    %120 = arith.subf %118, %119 : vector<2x128xf32>
    %121 = arith.select %13, %120, %116 : vector<2x128xi1>, vector<2x128xf32>
    %122 = vector.extract_strided_slice %121 {offsets = [0, 0], sizes = [2, 32], strides = [1, 1]} : vector<2x128xf32> to vector<2x32xf32>
    %123 = vector.extract_strided_slice %121 {offsets = [0, 32], sizes = [2, 32], strides = [1, 1]} : vector<2x128xf32> to vector<2x32xf32>
    %124 = vector.extract_strided_slice %121 {offsets = [0, 64], sizes = [2, 32], strides = [1, 1]} : vector<2x128xf32> to vector<2x32xf32>
    %125 = vector.extract_strided_slice %121 {offsets = [0, 96], sizes = [2, 32], strides = [1, 1]} : vector<2x128xf32> to vector<2x32xf32>
    %126 = arith.mulf %123, %70 : vector<2x32xf32>
    %127 = arith.mulf %122, %124 : vector<2x32xf32>
    %128 = arith.addf %126, %127 : vector<2x32xf32>
    %129 = math.tanh %128 : vector<2x32xf32>
    %130 = arith.mulf %125, %129 : vector<2x32xf32>
    %131 = arith.truncf %130 : vector<2x32xf32> to vector<2x32xbf16>
    %c0_45 = arith.constant 0 : index
    %c2 = arith.constant 2 : index
    %c0_46 = arith.constant 0 : index
    %132 = vector.load %arg1[%c0_45, %c2, %c0_46] : memref<2x8x32xbf16, #tpu.memory_space<vmem>>, vector<2x1x32xbf16>
    %133 = vector.shape_cast %132 : vector<2x1x32xbf16> to vector<2x32xbf16>
    %cst_47 = arith.constant dense<0.000000e+00> : vector<2x128xf32>
    %134 = tpu.matmul %133, %0, %cst_47 {dimension_numbers = #tpu.dot_dimension_numbers<[1], [0], [0], [1], [0, 0, 1, 1], [], []>} : vector<2x32xbf16>, vector<32x128xbf16>, vector<2x128xf32> -> vector<2x128xf32>
    %cst_48 = arith.constant dense<0.000000e+00> : vector<2x128xf32>
    %135 = tpu.matmul %103, %2, %cst_48 {dimension_numbers = #tpu.dot_dimension_numbers<[1], [0], [0], [1], [0, 0, 1, 1], [], []>} : vector<2x32xbf16>, vector<32x128xbf16>, vector<2x128xf32> -> vector<2x128xf32>
    %136 = arith.addf %134, %135 : vector<2x128xf32>
    %137 = vector.broadcast %4 : vector<1x128xf32> to vector<2x128xf32>
    %138 = arith.addf %136, %137 : vector<2x128xf32>
    %cst_49 = arith.constant 2.000000e+00 : f32
    %139 = vector.broadcast %cst_49 : f32 to vector<2x128xf32>
    %140 = arith.mulf %138, %139 : vector<2x128xf32>
    %141 = arith.select %13, %140, %138 : vector<2x128xi1>, vector<2x128xf32>
    %142 = arith.negf %141 : vector<2x128xf32>
    %143 = math.exp %142 : vector<2x128xf32>
    %cst_50 = arith.constant 1.000000e+00 : f32
    %144 = vector.broadcast %cst_50 : f32 to vector<2x128xf32>
    %145 = arith.addf %144, %143 : vector<2x128xf32>
    %146 = arith.divf %144, %145 : vector<2x128xf32>
    %cst_51 = arith.constant 2.000000e+00 : f32
    %147 = vector.broadcast %cst_51 : f32 to vector<2x128xf32>
    %148 = arith.mulf %147, %146 : vector<2x128xf32>
    %cst_52 = arith.constant 1.000000e+00 : f32
    %149 = vector.broadcast %cst_52 : f32 to vector<2x128xf32>
    %150 = arith.subf %148, %149 : vector<2x128xf32>
    %151 = arith.select %13, %150, %146 : vector<2x128xi1>, vector<2x128xf32>
    %152 = vector.extract_strided_slice %151 {offsets = [0, 0], sizes = [2, 32], strides = [1, 1]} : vector<2x128xf32> to vector<2x32xf32>
    %153 = vector.extract_strided_slice %151 {offsets = [0, 32], sizes = [2, 32], strides = [1, 1]} : vector<2x128xf32> to vector<2x32xf32>
    %154 = vector.extract_strided_slice %151 {offsets = [0, 64], sizes = [2, 32], strides = [1, 1]} : vector<2x128xf32> to vector<2x32xf32>
    %155 = vector.extract_strided_slice %151 {offsets = [0, 96], sizes = [2, 32], strides = [1, 1]} : vector<2x128xf32> to vector<2x32xf32>
    %156 = arith.mulf %153, %100 : vector<2x32xf32>
    %157 = arith.mulf %152, %154 : vector<2x32xf32>
    %158 = arith.addf %156, %157 : vector<2x32xf32>
    %159 = math.tanh %158 : vector<2x32xf32>
    %160 = arith.mulf %155, %159 : vector<2x32xf32>
    %161 = arith.truncf %160 : vector<2x32xf32> to vector<2x32xbf16>
    %cst_53 = arith.constant dense<0.000000e+00> : vector<2x128xf32>
    %162 = tpu.matmul %161, %1, %cst_53 {dimension_numbers = #tpu.dot_dimension_numbers<[1], [0], [0], [1], [0, 0, 1, 1], [], []>} : vector<2x32xbf16>, vector<32x128xbf16>, vector<2x128xf32> -> vector<2x128xf32>
    %cst_54 = arith.constant dense<0.000000e+00> : vector<2x128xf32>
    %163 = tpu.matmul %131, %3, %cst_54 {dimension_numbers = #tpu.dot_dimension_numbers<[1], [0], [0], [1], [0, 0, 1, 1], [], []>} : vector<2x32xbf16>, vector<32x128xbf16>, vector<2x128xf32> -> vector<2x128xf32>
    %164 = arith.addf %162, %163 : vector<2x128xf32>
    %165 = vector.broadcast %5 : vector<1x128xf32> to vector<2x128xf32>
    %166 = arith.addf %164, %165 : vector<2x128xf32>
    %cst_55 = arith.constant 2.000000e+00 : f32
    %167 = vector.broadcast %cst_55 : f32 to vector<2x128xf32>
    %168 = arith.mulf %166, %167 : vector<2x128xf32>
    %169 = arith.select %13, %168, %166 : vector<2x128xi1>, vector<2x128xf32>
    %170 = arith.negf %169 : vector<2x128xf32>
    %171 = math.exp %170 : vector<2x128xf32>
    %cst_56 = arith.constant 1.000000e+00 : f32
    %172 = vector.broadcast %cst_56 : f32 to vector<2x128xf32>
    %173 = arith.addf %172, %171 : vector<2x128xf32>
    %174 = arith.divf %172, %173 : vector<2x128xf32>
    %cst_57 = arith.constant 2.000000e+00 : f32
    %175 = vector.broadcast %cst_57 : f32 to vector<2x128xf32>
    %176 = arith.mulf %175, %174 : vector<2x128xf32>
    %cst_58 = arith.constant 1.000000e+00 : f32
    %177 = vector.broadcast %cst_58 : f32 to vector<2x128xf32>
    %178 = arith.subf %176, %177 : vector<2x128xf32>
    %179 = arith.select %13, %178, %174 : vector<2x128xi1>, vector<2x128xf32>
    %180 = vector.extract_strided_slice %179 {offsets = [0, 0], sizes = [2, 32], strides = [1, 1]} : vector<2x128xf32> to vector<2x32xf32>
    %181 = vector.extract_strided_slice %179 {offsets = [0, 32], sizes = [2, 32], strides = [1, 1]} : vector<2x128xf32> to vector<2x32xf32>
    %182 = vector.extract_strided_slice %179 {offsets = [0, 64], sizes = [2, 32], strides = [1, 1]} : vector<2x128xf32> to vector<2x32xf32>
    %183 = vector.extract_strided_slice %179 {offsets = [0, 96], sizes = [2, 32], strides = [1, 1]} : vector<2x128xf32> to vector<2x32xf32>
    %184 = arith.mulf %181, %128 : vector<2x32xf32>
    %185 = arith.mulf %180, %182 : vector<2x32xf32>
    %186 = arith.addf %184, %185 : vector<2x32xf32>
    %187 = math.tanh %186 : vector<2x32xf32>
    %188 = arith.mulf %183, %187 : vector<2x32xf32>
    %189 = arith.truncf %188 : vector<2x32xf32> to vector<2x32xbf16>
    %c0_59 = arith.constant 0 : index
    %c3 = arith.constant 3 : index
    %c0_60 = arith.constant 0 : index
    %190 = vector.load %arg1[%c0_59, %c3, %c0_60] : memref<2x8x32xbf16, #tpu.memory_space<vmem>>, vector<2x1x32xbf16>
    %191 = vector.shape_cast %190 : vector<2x1x32xbf16> to vector<2x32xbf16>
    %cst_61 = arith.constant dense<0.000000e+00> : vector<2x128xf32>
    %192 = tpu.matmul %191, %0, %cst_61 {dimension_numbers = #tpu.dot_dimension_numbers<[1], [0], [0], [1], [0, 0, 1, 1], [], []>} : vector<2x32xbf16>, vector<32x128xbf16>, vector<2x128xf32> -> vector<2x128xf32>
    %cst_62 = arith.constant dense<0.000000e+00> : vector<2x128xf32>
    %193 = tpu.matmul %161, %2, %cst_62 {dimension_numbers = #tpu.dot_dimension_numbers<[1], [0], [0], [1], [0, 0, 1, 1], [], []>} : vector<2x32xbf16>, vector<32x128xbf16>, vector<2x128xf32> -> vector<2x128xf32>
    %194 = arith.addf %192, %193 : vector<2x128xf32>
    %195 = vector.broadcast %4 : vector<1x128xf32> to vector<2x128xf32>
    %196 = arith.addf %194, %195 : vector<2x128xf32>
    %cst_63 = arith.constant 2.000000e+00 : f32
    %197 = vector.broadcast %cst_63 : f32 to vector<2x128xf32>
    %198 = arith.mulf %196, %197 : vector<2x128xf32>
    %199 = arith.select %13, %198, %196 : vector<2x128xi1>, vector<2x128xf32>
    %200 = arith.negf %199 : vector<2x128xf32>
    %201 = math.exp %200 : vector<2x128xf32>
    %cst_64 = arith.constant 1.000000e+00 : f32
    %202 = vector.broadcast %cst_64 : f32 to vector<2x128xf32>
    %203 = arith.addf %202, %201 : vector<2x128xf32>
    %204 = arith.divf %202, %203 : vector<2x128xf32>
    %cst_65 = arith.constant 2.000000e+00 : f32
    %205 = vector.broadcast %cst_65 : f32 to vector<2x128xf32>
    %206 = arith.mulf %205, %204 : vector<2x128xf32>
    %cst_66 = arith.constant 1.000000e+00 : f32
    %207 = vector.broadcast %cst_66 : f32 to vector<2x128xf32>
    %208 = arith.subf %206, %207 : vector<2x128xf32>
    %209 = arith.select %13, %208, %204 : vector<2x128xi1>, vector<2x128xf32>
    %210 = vector.extract_strided_slice %209 {offsets = [0, 0], sizes = [2, 32], strides = [1, 1]} : vector<2x128xf32> to vector<2x32xf32>
    %211 = vector.extract_strided_slice %209 {offsets = [0, 32], sizes = [2, 32], strides = [1, 1]} : vector<2x128xf32> to vector<2x32xf32>
    %212 = vector.extract_strided_slice %209 {offsets = [0, 64], sizes = [2, 32], strides = [1, 1]} : vector<2x128xf32> to vector<2x32xf32>
    %213 = vector.extract_strided_slice %209 {offsets = [0, 96], sizes = [2, 32], strides = [1, 1]} : vector<2x128xf32> to vector<2x32xf32>
    %214 = arith.mulf %211, %158 : vector<2x32xf32>
    %215 = arith.mulf %210, %212 : vector<2x32xf32>
    %216 = arith.addf %214, %215 : vector<2x32xf32>
    %217 = math.tanh %216 : vector<2x32xf32>
    %218 = arith.mulf %213, %217 : vector<2x32xf32>
    %219 = arith.truncf %218 : vector<2x32xf32> to vector<2x32xbf16>
    %cst_67 = arith.constant dense<0.000000e+00> : vector<2x128xf32>
    %220 = tpu.matmul %219, %1, %cst_67 {dimension_numbers = #tpu.dot_dimension_numbers<[1], [0], [0], [1], [0, 0, 1, 1], [], []>} : vector<2x32xbf16>, vector<32x128xbf16>, vector<2x128xf32> -> vector<2x128xf32>
    %cst_68 = arith.constant dense<0.000000e+00> : vector<2x128xf32>
    %221 = tpu.matmul %189, %3, %cst_68 {dimension_numbers = #tpu.dot_dimension_numbers<[1], [0], [0], [1], [0, 0, 1, 1], [], []>} : vector<2x32xbf16>, vector<32x128xbf16>, vector<2x128xf32> -> vector<2x128xf32>
    %222 = arith.addf %220, %221 : vector<2x128xf32>
    %223 = vector.broadcast %5 : vector<1x128xf32> to vector<2x128xf32>
    %224 = arith.addf %222, %223 : vector<2x128xf32>
    %cst_69 = arith.constant 2.000000e+00 : f32
    %225 = vector.broadcast %cst_69 : f32 to vector<2x128xf32>
    %226 = arith.mulf %224, %225 : vector<2x128xf32>
    %227 = arith.select %13, %226, %224 : vector<2x128xi1>, vector<2x128xf32>
    %228 = arith.negf %227 : vector<2x128xf32>
    %229 = math.exp %228 : vector<2x128xf32>
    %cst_70 = arith.constant 1.000000e+00 : f32
    %230 = vector.broadcast %cst_70 : f32 to vector<2x128xf32>
    %231 = arith.addf %230, %229 : vector<2x128xf32>
    %232 = arith.divf %230, %231 : vector<2x128xf32>
    %cst_71 = arith.constant 2.000000e+00 : f32
    %233 = vector.broadcast %cst_71 : f32 to vector<2x128xf32>
    %234 = arith.mulf %233, %232 : vector<2x128xf32>
    %cst_72 = arith.constant 1.000000e+00 : f32
    %235 = vector.broadcast %cst_72 : f32 to vector<2x128xf32>
    %236 = arith.subf %234, %235 : vector<2x128xf32>
    %237 = arith.select %13, %236, %232 : vector<2x128xi1>, vector<2x128xf32>
    %238 = vector.extract_strided_slice %237 {offsets = [0, 0], sizes = [2, 32], strides = [1, 1]} : vector<2x128xf32> to vector<2x32xf32>
    %239 = vector.extract_strided_slice %237 {offsets = [0, 32], sizes = [2, 32], strides = [1, 1]} : vector<2x128xf32> to vector<2x32xf32>
    %240 = vector.extract_strided_slice %237 {offsets = [0, 64], sizes = [2, 32], strides = [1, 1]} : vector<2x128xf32> to vector<2x32xf32>
    %241 = vector.extract_strided_slice %237 {offsets = [0, 96], sizes = [2, 32], strides = [1, 1]} : vector<2x128xf32> to vector<2x32xf32>
    %242 = arith.mulf %239, %186 : vector<2x32xf32>
    %243 = arith.mulf %238, %240 : vector<2x32xf32>
    %244 = arith.addf %242, %243 : vector<2x32xf32>
    %245 = math.tanh %244 : vector<2x32xf32>
    %246 = arith.mulf %241, %245 : vector<2x32xf32>
    %247 = arith.truncf %246 : vector<2x32xf32> to vector<2x32xbf16>
    %c0_73 = arith.constant 0 : index
    %c4 = arith.constant 4 : index
    %c0_74 = arith.constant 0 : index
    %248 = vector.load %arg1[%c0_73, %c4, %c0_74] : memref<2x8x32xbf16, #tpu.memory_space<vmem>>, vector<2x1x32xbf16>
    %249 = vector.shape_cast %248 : vector<2x1x32xbf16> to vector<2x32xbf16>
    %cst_75 = arith.constant dense<0.000000e+00> : vector<2x128xf32>
    %250 = tpu.matmul %249, %0, %cst_75 {dimension_numbers = #tpu.dot_dimension_numbers<[1], [0], [0], [1], [0, 0, 1, 1], [], []>} : vector<2x32xbf16>, vector<32x128xbf16>, vector<2x128xf32> -> vector<2x128xf32>
    %cst_76 = arith.constant dense<0.000000e+00> : vector<2x128xf32>
    %251 = tpu.matmul %219, %2, %cst_76 {dimension_numbers = #tpu.dot_dimension_numbers<[1], [0], [0], [1], [0, 0, 1, 1], [], []>} : vector<2x32xbf16>, vector<32x128xbf16>, vector<2x128xf32> -> vector<2x128xf32>
    %252 = arith.addf %250, %251 : vector<2x128xf32>
    %253 = vector.broadcast %4 : vector<1x128xf32> to vector<2x128xf32>
    %254 = arith.addf %252, %253 : vector<2x128xf32>
    %cst_77 = arith.constant 2.000000e+00 : f32
    %255 = vector.broadcast %cst_77 : f32 to vector<2x128xf32>
    %256 = arith.mulf %254, %255 : vector<2x128xf32>
    %257 = arith.select %13, %256, %254 : vector<2x128xi1>, vector<2x128xf32>
    %258 = arith.negf %257 : vector<2x128xf32>
    %259 = math.exp %258 : vector<2x128xf32>
    %cst_78 = arith.constant 1.000000e+00 : f32
    %260 = vector.broadcast %cst_78 : f32 to vector<2x128xf32>
    %261 = arith.addf %260, %259 : vector<2x128xf32>
    %262 = arith.divf %260, %261 : vector<2x128xf32>
    %cst_79 = arith.constant 2.000000e+00 : f32
    %263 = vector.broadcast %cst_79 : f32 to vector<2x128xf32>
    %264 = arith.mulf %263, %262 : vector<2x128xf32>
    %cst_80 = arith.constant 1.000000e+00 : f32
    %265 = vector.broadcast %cst_80 : f32 to vector<2x128xf32>
    %266 = arith.subf %264, %265 : vector<2x128xf32>
    %267 = arith.select %13, %266, %262 : vector<2x128xi1>, vector<2x128xf32>
    %268 = vector.extract_strided_slice %267 {offsets = [0, 0], sizes = [2, 32], strides = [1, 1]} : vector<2x128xf32> to vector<2x32xf32>
    %269 = vector.extract_strided_slice %267 {offsets = [0, 32], sizes = [2, 32], strides = [1, 1]} : vector<2x128xf32> to vector<2x32xf32>
    %270 = vector.extract_strided_slice %267 {offsets = [0, 64], sizes = [2, 32], strides = [1, 1]} : vector<2x128xf32> to vector<2x32xf32>
    %271 = vector.extract_strided_slice %267 {offsets = [0, 96], sizes = [2, 32], strides = [1, 1]} : vector<2x128xf32> to vector<2x32xf32>
    %272 = arith.mulf %269, %216 : vector<2x32xf32>
    %273 = arith.mulf %268, %270 : vector<2x32xf32>
    %274 = arith.addf %272, %273 : vector<2x32xf32>
    %275 = math.tanh %274 : vector<2x32xf32>
    %276 = arith.mulf %271, %275 : vector<2x32xf32>
    %277 = arith.truncf %276 : vector<2x32xf32> to vector<2x32xbf16>
    %cst_81 = arith.constant dense<0.000000e+00> : vector<2x128xf32>
    %278 = tpu.matmul %277, %1, %cst_81 {dimension_numbers = #tpu.dot_dimension_numbers<[1], [0], [0], [1], [0, 0, 1, 1], [], []>} : vector<2x32xbf16>, vector<32x128xbf16>, vector<2x128xf32> -> vector<2x128xf32>
    %cst_82 = arith.constant dense<0.000000e+00> : vector<2x128xf32>
    %279 = tpu.matmul %247, %3, %cst_82 {dimension_numbers = #tpu.dot_dimension_numbers<[1], [0], [0], [1], [0, 0, 1, 1], [], []>} : vector<2x32xbf16>, vector<32x128xbf16>, vector<2x128xf32> -> vector<2x128xf32>
    %280 = arith.addf %278, %279 : vector<2x128xf32>
    %281 = vector.broadcast %5 : vector<1x128xf32> to vector<2x128xf32>
    %282 = arith.addf %280, %281 : vector<2x128xf32>
    %cst_83 = arith.constant 2.000000e+00 : f32
    %283 = vector.broadcast %cst_83 : f32 to vector<2x128xf32>
    %284 = arith.mulf %282, %283 : vector<2x128xf32>
    %285 = arith.select %13, %284, %282 : vector<2x128xi1>, vector<2x128xf32>
    %286 = arith.negf %285 : vector<2x128xf32>
    %287 = math.exp %286 : vector<2x128xf32>
    %cst_84 = arith.constant 1.000000e+00 : f32
    %288 = vector.broadcast %cst_84 : f32 to vector<2x128xf32>
    %289 = arith.addf %288, %287 : vector<2x128xf32>
    %290 = arith.divf %288, %289 : vector<2x128xf32>
    %cst_85 = arith.constant 2.000000e+00 : f32
    %291 = vector.broadcast %cst_85 : f32 to vector<2x128xf32>
    %292 = arith.mulf %291, %290 : vector<2x128xf32>
    %cst_86 = arith.constant 1.000000e+00 : f32
    %293 = vector.broadcast %cst_86 : f32 to vector<2x128xf32>
    %294 = arith.subf %292, %293 : vector<2x128xf32>
    %295 = arith.select %13, %294, %290 : vector<2x128xi1>, vector<2x128xf32>
    %296 = vector.extract_strided_slice %295 {offsets = [0, 0], sizes = [2, 32], strides = [1, 1]} : vector<2x128xf32> to vector<2x32xf32>
    %297 = vector.extract_strided_slice %295 {offsets = [0, 32], sizes = [2, 32], strides = [1, 1]} : vector<2x128xf32> to vector<2x32xf32>
    %298 = vector.extract_strided_slice %295 {offsets = [0, 64], sizes = [2, 32], strides = [1, 1]} : vector<2x128xf32> to vector<2x32xf32>
    %299 = vector.extract_strided_slice %295 {offsets = [0, 96], sizes = [2, 32], strides = [1, 1]} : vector<2x128xf32> to vector<2x32xf32>
    %300 = arith.mulf %297, %244 : vector<2x32xf32>
    %301 = arith.mulf %296, %298 : vector<2x32xf32>
    %302 = arith.addf %300, %301 : vector<2x32xf32>
    %303 = math.tanh %302 : vector<2x32xf32>
    %304 = arith.mulf %299, %303 : vector<2x32xf32>
    %305 = arith.truncf %304 : vector<2x32xf32> to vector<2x32xbf16>
    %c0_87 = arith.constant 0 : index
    %c5 = arith.constant 5 : index
    %c0_88 = arith.constant 0 : index
    %306 = vector.load %arg1[%c0_87, %c5, %c0_88] : memref<2x8x32xbf16, #tpu.memory_space<vmem>>, vector<2x1x32xbf16>
    %307 = vector.shape_cast %306 : vector<2x1x32xbf16> to vector<2x32xbf16>
    %cst_89 = arith.constant dense<0.000000e+00> : vector<2x128xf32>
    %308 = tpu.matmul %307, %0, %cst_89 {dimension_numbers = #tpu.dot_dimension_numbers<[1], [0], [0], [1], [0, 0, 1, 1], [], []>} : vector<2x32xbf16>, vector<32x128xbf16>, vector<2x128xf32> -> vector<2x128xf32>
    %cst_90 = arith.constant dense<0.000000e+00> : vector<2x128xf32>
    %309 = tpu.matmul %277, %2, %cst_90 {dimension_numbers = #tpu.dot_dimension_numbers<[1], [0], [0], [1], [0, 0, 1, 1], [], []>} : vector<2x32xbf16>, vector<32x128xbf16>, vector<2x128xf32> -> vector<2x128xf32>
    %310 = arith.addf %308, %309 : vector<2x128xf32>
    %311 = vector.broadcast %4 : vector<1x128xf32> to vector<2x128xf32>
    %312 = arith.addf %310, %311 : vector<2x128xf32>
    %cst_91 = arith.constant 2.000000e+00 : f32
    %313 = vector.broadcast %cst_91 : f32 to vector<2x128xf32>
    %314 = arith.mulf %312, %313 : vector<2x128xf32>
    %315 = arith.select %13, %314, %312 : vector<2x128xi1>, vector<2x128xf32>
    %316 = arith.negf %315 : vector<2x128xf32>
    %317 = math.exp %316 : vector<2x128xf32>
    %cst_92 = arith.constant 1.000000e+00 : f32
    %318 = vector.broadcast %cst_92 : f32 to vector<2x128xf32>
    %319 = arith.addf %318, %317 : vector<2x128xf32>
    %320 = arith.divf %318, %319 : vector<2x128xf32>
    %cst_93 = arith.constant 2.000000e+00 : f32
    %321 = vector.broadcast %cst_93 : f32 to vector<2x128xf32>
    %322 = arith.mulf %321, %320 : vector<2x128xf32>
    %cst_94 = arith.constant 1.000000e+00 : f32
    %323 = vector.broadcast %cst_94 : f32 to vector<2x128xf32>
    %324 = arith.subf %322, %323 : vector<2x128xf32>
    %325 = arith.select %13, %324, %320 : vector<2x128xi1>, vector<2x128xf32>
    %326 = vector.extract_strided_slice %325 {offsets = [0, 0], sizes = [2, 32], strides = [1, 1]} : vector<2x128xf32> to vector<2x32xf32>
    %327 = vector.extract_strided_slice %325 {offsets = [0, 32], sizes = [2, 32], strides = [1, 1]} : vector<2x128xf32> to vector<2x32xf32>
    %328 = vector.extract_strided_slice %325 {offsets = [0, 64], sizes = [2, 32], strides = [1, 1]} : vector<2x128xf32> to vector<2x32xf32>
    %329 = vector.extract_strided_slice %325 {offsets = [0, 96], sizes = [2, 32], strides = [1, 1]} : vector<2x128xf32> to vector<2x32xf32>
    %330 = arith.mulf %327, %274 : vector<2x32xf32>
    %331 = arith.mulf %326, %328 : vector<2x32xf32>
    %332 = arith.addf %330, %331 : vector<2x32xf32>
    %333 = math.tanh %332 : vector<2x32xf32>
    %334 = arith.mulf %329, %333 : vector<2x32xf32>
    %335 = arith.truncf %334 : vector<2x32xf32> to vector<2x32xbf16>
    %cst_95 = arith.constant dense<0.000000e+00> : vector<2x128xf32>
    %336 = tpu.matmul %335, %1, %cst_95 {dimension_numbers = #tpu.dot_dimension_numbers<[1], [0], [0], [1], [0, 0, 1, 1], [], []>} : vector<2x32xbf16>, vector<32x128xbf16>, vector<2x128xf32> -> vector<2x128xf32>
    %cst_96 = arith.constant dense<0.000000e+00> : vector<2x128xf32>
    %337 = tpu.matmul %305, %3, %cst_96 {dimension_numbers = #tpu.dot_dimension_numbers<[1], [0], [0], [1], [0, 0, 1, 1], [], []>} : vector<2x32xbf16>, vector<32x128xbf16>, vector<2x128xf32> -> vector<2x128xf32>
    %338 = arith.addf %336, %337 : vector<2x128xf32>
    %339 = vector.broadcast %5 : vector<1x128xf32> to vector<2x128xf32>
    %340 = arith.addf %338, %339 : vector<2x128xf32>
    %cst_97 = arith.constant 2.000000e+00 : f32
    %341 = vector.broadcast %cst_97 : f32 to vector<2x128xf32>
    %342 = arith.mulf %340, %341 : vector<2x128xf32>
    %343 = arith.select %13, %342, %340 : vector<2x128xi1>, vector<2x128xf32>
    %344 = arith.negf %343 : vector<2x128xf32>
    %345 = math.exp %344 : vector<2x128xf32>
    %cst_98 = arith.constant 1.000000e+00 : f32
    %346 = vector.broadcast %cst_98 : f32 to vector<2x128xf32>
    %347 = arith.addf %346, %345 : vector<2x128xf32>
    %348 = arith.divf %346, %347 : vector<2x128xf32>
    %cst_99 = arith.constant 2.000000e+00 : f32
    %349 = vector.broadcast %cst_99 : f32 to vector<2x128xf32>
    %350 = arith.mulf %349, %348 : vector<2x128xf32>
    %cst_100 = arith.constant 1.000000e+00 : f32
    %351 = vector.broadcast %cst_100 : f32 to vector<2x128xf32>
    %352 = arith.subf %350, %351 : vector<2x128xf32>
    %353 = arith.select %13, %352, %348 : vector<2x128xi1>, vector<2x128xf32>
    %354 = vector.extract_strided_slice %353 {offsets = [0, 0], sizes = [2, 32], strides = [1, 1]} : vector<2x128xf32> to vector<2x32xf32>
    %355 = vector.extract_strided_slice %353 {offsets = [0, 32], sizes = [2, 32], strides = [1, 1]} : vector<2x128xf32> to vector<2x32xf32>
    %356 = vector.extract_strided_slice %353 {offsets = [0, 64], sizes = [2, 32], strides = [1, 1]} : vector<2x128xf32> to vector<2x32xf32>
    %357 = vector.extract_strided_slice %353 {offsets = [0, 96], sizes = [2, 32], strides = [1, 1]} : vector<2x128xf32> to vector<2x32xf32>
    %358 = arith.mulf %355, %302 : vector<2x32xf32>
    %359 = arith.mulf %354, %356 : vector<2x32xf32>
    %360 = arith.addf %358, %359 : vector<2x32xf32>
    %361 = math.tanh %360 : vector<2x32xf32>
    %362 = arith.mulf %357, %361 : vector<2x32xf32>
    %363 = arith.truncf %362 : vector<2x32xf32> to vector<2x32xbf16>
    %c0_101 = arith.constant 0 : index
    %c6 = arith.constant 6 : index
    %c0_102 = arith.constant 0 : index
    %364 = vector.load %arg1[%c0_101, %c6, %c0_102] : memref<2x8x32xbf16, #tpu.memory_space<vmem>>, vector<2x1x32xbf16>
    %365 = vector.shape_cast %364 : vector<2x1x32xbf16> to vector<2x32xbf16>
    %cst_103 = arith.constant dense<0.000000e+00> : vector<2x128xf32>
    %366 = tpu.matmul %365, %0, %cst_103 {dimension_numbers = #tpu.dot_dimension_numbers<[1], [0], [0], [1], [0, 0, 1, 1], [], []>} : vector<2x32xbf16>, vector<32x128xbf16>, vector<2x128xf32> -> vector<2x128xf32>
    %cst_104 = arith.constant dense<0.000000e+00> : vector<2x128xf32>
    %367 = tpu.matmul %335, %2, %cst_104 {dimension_numbers = #tpu.dot_dimension_numbers<[1], [0], [0], [1], [0, 0, 1, 1], [], []>} : vector<2x32xbf16>, vector<32x128xbf16>, vector<2x128xf32> -> vector<2x128xf32>
    %368 = arith.addf %366, %367 : vector<2x128xf32>
    %369 = vector.broadcast %4 : vector<1x128xf32> to vector<2x128xf32>
    %370 = arith.addf %368, %369 : vector<2x128xf32>
    %cst_105 = arith.constant 2.000000e+00 : f32
    %371 = vector.broadcast %cst_105 : f32 to vector<2x128xf32>
    %372 = arith.mulf %370, %371 : vector<2x128xf32>
    %373 = arith.select %13, %372, %370 : vector<2x128xi1>, vector<2x128xf32>
    %374 = arith.negf %373 : vector<2x128xf32>
    %375 = math.exp %374 : vector<2x128xf32>
    %cst_106 = arith.constant 1.000000e+00 : f32
    %376 = vector.broadcast %cst_106 : f32 to vector<2x128xf32>
    %377 = arith.addf %376, %375 : vector<2x128xf32>
    %378 = arith.divf %376, %377 : vector<2x128xf32>
    %cst_107 = arith.constant 2.000000e+00 : f32
    %379 = vector.broadcast %cst_107 : f32 to vector<2x128xf32>
    %380 = arith.mulf %379, %378 : vector<2x128xf32>
    %cst_108 = arith.constant 1.000000e+00 : f32
    %381 = vector.broadcast %cst_108 : f32 to vector<2x128xf32>
    %382 = arith.subf %380, %381 : vector<2x128xf32>
    %383 = arith.select %13, %382, %378 : vector<2x128xi1>, vector<2x128xf32>
    %384 = vector.extract_strided_slice %383 {offsets = [0, 0], sizes = [2, 32], strides = [1, 1]} : vector<2x128xf32> to vector<2x32xf32>
    %385 = vector.extract_strided_slice %383 {offsets = [0, 32], sizes = [2, 32], strides = [1, 1]} : vector<2x128xf32> to vector<2x32xf32>
    %386 = vector.extract_strided_slice %383 {offsets = [0, 64], sizes = [2, 32], strides = [1, 1]} : vector<2x128xf32> to vector<2x32xf32>
    %387 = vector.extract_strided_slice %383 {offsets = [0, 96], sizes = [2, 32], strides = [1, 1]} : vector<2x128xf32> to vector<2x32xf32>
    %388 = arith.mulf %385, %332 : vector<2x32xf32>
    %389 = arith.mulf %384, %386 : vector<2x32xf32>
    %390 = arith.addf %388, %389 : vector<2x32xf32>
    %391 = math.tanh %390 : vector<2x32xf32>
    %392 = arith.mulf %387, %391 : vector<2x32xf32>
    %393 = arith.truncf %392 : vector<2x32xf32> to vector<2x32xbf16>
    %cst_109 = arith.constant dense<0.000000e+00> : vector<2x128xf32>
    %394 = tpu.matmul %393, %1, %cst_109 {dimension_numbers = #tpu.dot_dimension_numbers<[1], [0], [0], [1], [0, 0, 1, 1], [], []>} : vector<2x32xbf16>, vector<32x128xbf16>, vector<2x128xf32> -> vector<2x128xf32>
    %cst_110 = arith.constant dense<0.000000e+00> : vector<2x128xf32>
    %395 = tpu.matmul %363, %3, %cst_110 {dimension_numbers = #tpu.dot_dimension_numbers<[1], [0], [0], [1], [0, 0, 1, 1], [], []>} : vector<2x32xbf16>, vector<32x128xbf16>, vector<2x128xf32> -> vector<2x128xf32>
    %396 = arith.addf %394, %395 : vector<2x128xf32>
    %397 = vector.broadcast %5 : vector<1x128xf32> to vector<2x128xf32>
    %398 = arith.addf %396, %397 : vector<2x128xf32>
    %cst_111 = arith.constant 2.000000e+00 : f32
    %399 = vector.broadcast %cst_111 : f32 to vector<2x128xf32>
    %400 = arith.mulf %398, %399 : vector<2x128xf32>
    %401 = arith.select %13, %400, %398 : vector<2x128xi1>, vector<2x128xf32>
    %402 = arith.negf %401 : vector<2x128xf32>
    %403 = math.exp %402 : vector<2x128xf32>
    %cst_112 = arith.constant 1.000000e+00 : f32
    %404 = vector.broadcast %cst_112 : f32 to vector<2x128xf32>
    %405 = arith.addf %404, %403 : vector<2x128xf32>
    %406 = arith.divf %404, %405 : vector<2x128xf32>
    %cst_113 = arith.constant 2.000000e+00 : f32
    %407 = vector.broadcast %cst_113 : f32 to vector<2x128xf32>
    %408 = arith.mulf %407, %406 : vector<2x128xf32>
    %cst_114 = arith.constant 1.000000e+00 : f32
    %409 = vector.broadcast %cst_114 : f32 to vector<2x128xf32>
    %410 = arith.subf %408, %409 : vector<2x128xf32>
    %411 = arith.select %13, %410, %406 : vector<2x128xi1>, vector<2x128xf32>
    %412 = vector.extract_strided_slice %411 {offsets = [0, 0], sizes = [2, 32], strides = [1, 1]} : vector<2x128xf32> to vector<2x32xf32>
    %413 = vector.extract_strided_slice %411 {offsets = [0, 32], sizes = [2, 32], strides = [1, 1]} : vector<2x128xf32> to vector<2x32xf32>
    %414 = vector.extract_strided_slice %411 {offsets = [0, 64], sizes = [2, 32], strides = [1, 1]} : vector<2x128xf32> to vector<2x32xf32>
    %415 = vector.extract_strided_slice %411 {offsets = [0, 96], sizes = [2, 32], strides = [1, 1]} : vector<2x128xf32> to vector<2x32xf32>
    %416 = arith.mulf %413, %360 : vector<2x32xf32>
    %417 = arith.mulf %412, %414 : vector<2x32xf32>
    %418 = arith.addf %416, %417 : vector<2x32xf32>
    %419 = math.tanh %418 : vector<2x32xf32>
    %420 = arith.mulf %415, %419 : vector<2x32xf32>
    %421 = arith.truncf %420 : vector<2x32xf32> to vector<2x32xbf16>
    %c0_115 = arith.constant 0 : index
    %c7 = arith.constant 7 : index
    %c0_116 = arith.constant 0 : index
    %422 = vector.load %arg1[%c0_115, %c7, %c0_116] : memref<2x8x32xbf16, #tpu.memory_space<vmem>>, vector<2x1x32xbf16>
    %423 = vector.shape_cast %422 : vector<2x1x32xbf16> to vector<2x32xbf16>
    %cst_117 = arith.constant dense<0.000000e+00> : vector<2x128xf32>
    %424 = tpu.matmul %423, %0, %cst_117 {dimension_numbers = #tpu.dot_dimension_numbers<[1], [0], [0], [1], [0, 0, 1, 1], [], []>} : vector<2x32xbf16>, vector<32x128xbf16>, vector<2x128xf32> -> vector<2x128xf32>
    %cst_118 = arith.constant dense<0.000000e+00> : vector<2x128xf32>
    %425 = tpu.matmul %393, %2, %cst_118 {dimension_numbers = #tpu.dot_dimension_numbers<[1], [0], [0], [1], [0, 0, 1, 1], [], []>} : vector<2x32xbf16>, vector<32x128xbf16>, vector<2x128xf32> -> vector<2x128xf32>
    %426 = arith.addf %424, %425 : vector<2x128xf32>
    %427 = vector.broadcast %4 : vector<1x128xf32> to vector<2x128xf32>
    %428 = arith.addf %426, %427 : vector<2x128xf32>
    %cst_119 = arith.constant 2.000000e+00 : f32
    %429 = vector.broadcast %cst_119 : f32 to vector<2x128xf32>
    %430 = arith.mulf %428, %429 : vector<2x128xf32>
    %431 = arith.select %13, %430, %428 : vector<2x128xi1>, vector<2x128xf32>
    %432 = arith.negf %431 : vector<2x128xf32>
    %433 = math.exp %432 : vector<2x128xf32>
    %cst_120 = arith.constant 1.000000e+00 : f32
    %434 = vector.broadcast %cst_120 : f32 to vector<2x128xf32>
    %435 = arith.addf %434, %433 : vector<2x128xf32>
    %436 = arith.divf %434, %435 : vector<2x128xf32>
    %cst_121 = arith.constant 2.000000e+00 : f32
    %437 = vector.broadcast %cst_121 : f32 to vector<2x128xf32>
    %438 = arith.mulf %437, %436 : vector<2x128xf32>
    %cst_122 = arith.constant 1.000000e+00 : f32
    %439 = vector.broadcast %cst_122 : f32 to vector<2x128xf32>
    %440 = arith.subf %438, %439 : vector<2x128xf32>
    %441 = arith.select %13, %440, %436 : vector<2x128xi1>, vector<2x128xf32>
    %442 = vector.extract_strided_slice %441 {offsets = [0, 0], sizes = [2, 32], strides = [1, 1]} : vector<2x128xf32> to vector<2x32xf32>
    %443 = vector.extract_strided_slice %441 {offsets = [0, 32], sizes = [2, 32], strides = [1, 1]} : vector<2x128xf32> to vector<2x32xf32>
    %444 = vector.extract_strided_slice %441 {offsets = [0, 64], sizes = [2, 32], strides = [1, 1]} : vector<2x128xf32> to vector<2x32xf32>
    %445 = vector.extract_strided_slice %441 {offsets = [0, 96], sizes = [2, 32], strides = [1, 1]} : vector<2x128xf32> to vector<2x32xf32>
    %446 = arith.mulf %443, %390 : vector<2x32xf32>
    %447 = arith.mulf %442, %444 : vector<2x32xf32>
    %448 = arith.addf %446, %447 : vector<2x32xf32>
    %449 = math.tanh %448 : vector<2x32xf32>
    %450 = arith.mulf %445, %449 : vector<2x32xf32>
    %451 = arith.truncf %450 : vector<2x32xf32> to vector<2x32xbf16>
    %cst_123 = arith.constant dense<0.000000e+00> : vector<2x128xf32>
    %452 = tpu.matmul %451, %1, %cst_123 {dimension_numbers = #tpu.dot_dimension_numbers<[1], [0], [0], [1], [0, 0, 1, 1], [], []>} : vector<2x32xbf16>, vector<32x128xbf16>, vector<2x128xf32> -> vector<2x128xf32>
    %cst_124 = arith.constant dense<0.000000e+00> : vector<2x128xf32>
    %453 = tpu.matmul %421, %3, %cst_124 {dimension_numbers = #tpu.dot_dimension_numbers<[1], [0], [0], [1], [0, 0, 1, 1], [], []>} : vector<2x32xbf16>, vector<32x128xbf16>, vector<2x128xf32> -> vector<2x128xf32>
    %454 = arith.addf %452, %453 : vector<2x128xf32>
    %455 = vector.broadcast %5 : vector<1x128xf32> to vector<2x128xf32>
    %456 = arith.addf %454, %455 : vector<2x128xf32>
    %cst_125 = arith.constant 2.000000e+00 : f32
    %457 = vector.broadcast %cst_125 : f32 to vector<2x128xf32>
    %458 = arith.mulf %456, %457 : vector<2x128xf32>
    %459 = arith.select %13, %458, %456 : vector<2x128xi1>, vector<2x128xf32>
    %460 = arith.negf %459 : vector<2x128xf32>
    %461 = math.exp %460 : vector<2x128xf32>
    %cst_126 = arith.constant 1.000000e+00 : f32
    %462 = vector.broadcast %cst_126 : f32 to vector<2x128xf32>
    %463 = arith.addf %462, %461 : vector<2x128xf32>
    %464 = arith.divf %462, %463 : vector<2x128xf32>
    %cst_127 = arith.constant 2.000000e+00 : f32
    %465 = vector.broadcast %cst_127 : f32 to vector<2x128xf32>
    %466 = arith.mulf %465, %464 : vector<2x128xf32>
    %cst_128 = arith.constant 1.000000e+00 : f32
    %467 = vector.broadcast %cst_128 : f32 to vector<2x128xf32>
    %468 = arith.subf %466, %467 : vector<2x128xf32>
    %469 = arith.select %13, %468, %464 : vector<2x128xi1>, vector<2x128xf32>
    %470 = vector.extract_strided_slice %469 {offsets = [0, 0], sizes = [2, 32], strides = [1, 1]} : vector<2x128xf32> to vector<2x32xf32>
    %471 = vector.extract_strided_slice %469 {offsets = [0, 32], sizes = [2, 32], strides = [1, 1]} : vector<2x128xf32> to vector<2x32xf32>
    %472 = vector.extract_strided_slice %469 {offsets = [0, 64], sizes = [2, 32], strides = [1, 1]} : vector<2x128xf32> to vector<2x32xf32>
    %473 = vector.extract_strided_slice %469 {offsets = [0, 96], sizes = [2, 32], strides = [1, 1]} : vector<2x128xf32> to vector<2x32xf32>
    %474 = arith.mulf %471, %418 : vector<2x32xf32>
    %475 = arith.mulf %470, %472 : vector<2x32xf32>
    %476 = arith.addf %474, %475 : vector<2x32xf32>
    %477 = math.tanh %476 : vector<2x32xf32>
    %478 = arith.mulf %473, %477 : vector<2x32xf32>
    %479 = arith.truncf %478 : vector<2x32xf32> to vector<2x32xbf16>
    %cst_129 = arith.constant dense<0.000000e+00> : vector<2x16xf32>
    %480 = tpu.matmul %479, %6, %cst_129 {dimension_numbers = #tpu.dot_dimension_numbers<[1], [0], [0], [1], [0, 0, 1, 1], [], []>} : vector<2x32xbf16>, vector<32x16xbf16>, vector<2x16xf32> -> vector<2x16xf32>
    %481 = vector.broadcast %7 : vector<1x16xf32> to vector<2x16xf32>
    %482 = arith.addf %480, %481 : vector<2x16xf32>
    %483 = arith.mulf %482, %482 : vector<2x16xf32>
    %cst_130 = arith.constant dense<0.000000e+00> : vector<2xf32>
    %484 = vector.multi_reduction <add>, %483, %cst_130 [1] : vector<2x16xf32> to vector<2xf32>
    %485 = vector.shape_cast %484 : vector<2xf32> to vector<2x1xf32>
    %cst_131 = arith.constant 9.99999996E-13 : f32
    %486 = vector.broadcast %cst_131 : f32 to vector<2x1xf32>
    %487 = arith.addf %485, %486 : vector<2x1xf32>
    %488 = math.rsqrt %487 : vector<2x1xf32>
    %489 = vector.broadcast %488 : vector<2x1xf32> to vector<2x16xf32>
    %490 = arith.mulf %482, %489 : vector<2x16xf32>
    %c0_132 = arith.constant 0 : index
    %c0_133 = arith.constant 0 : index
    %491 = vector.load %arg10[%c0_132, %c0_133] : memref<2x16xf32, #tpu.memory_space<vmem>>, vector<2x16xf32>
    tpu.vector_store %arg10[%c0_132, %c0_133], %490 {strides = array<i32>} : memref<2x16xf32, #tpu.memory_space<vmem>>, vector<2x16xf32>,
    return
  }
  func.func @transform_0(%arg0: i32) -> (i32, i32, i32) {
    %c0_i32 = arith.constant 0 : i32
    %c0_i32_0 = arith.constant 0 : i32
    %c0_i32_1 = arith.constant 0 : i32
    return %arg0, %c0_i32, %c0_i32_0 : i32, i32, i32
  }
  func.func @transform_1(%arg0: i32) -> (i32, i32) {
    %c0_i32 = arith.constant 0 : i32
    %c0_i32_0 = arith.constant 0 : i32
    %c0_i32_1 = arith.constant 0 : i32
    return %c0_i32, %c0_i32_0 : i32, i32
  }
  func.func @transform_2(%arg0: i32) -> (i32, i32) {
    %c0_i32 = arith.constant 0 : i32
    %c0_i32_0 = arith.constant 0 : i32
    %c0_i32_1 = arith.constant 0 : i32
    return %c0_i32, %c0_i32_0 : i32, i32
  }
  func.func @transform_3(%arg0: i32) -> (i32, i32) {
    %c0_i32 = arith.constant 0 : i32
    %c0_i32_0 = arith.constant 0 : i32
    %c0_i32_1 = arith.constant 0 : i32
    return %c0_i32, %c0_i32_0 : i32, i32
  }
  func.func @transform_4(%arg0: i32) -> (i32, i32) {
    %c0_i32 = arith.constant 0 : i32
    %c0_i32_0 = arith.constant 0 : i32
    %c0_i32_1 = arith.constant 0 : i32
    return %c0_i32, %c0_i32_0 : i32, i32
  }
  func.func @transform_5(%arg0: i32) -> (i32, i32) {
    %c0_i32 = arith.constant 0 : i32
    %c0_i32_0 = arith.constant 0 : i32
    %c0_i32_1 = arith.constant 0 : i32
    return %c0_i32, %c0_i32_0 : i32, i32
  }
  func.func @transform_6(%arg0: i32) -> (i32, i32) {
    %c0_i32 = arith.constant 0 : i32
    %c0_i32_0 = arith.constant 0 : i32
    %c0_i32_1 = arith.constant 0 : i32
    return %c0_i32, %c0_i32_0 : i32, i32
  }
  func.func @transform_7(%arg0: i32) -> (i32, i32) {
    %c0_i32 = arith.constant 0 : i32
    %c0_i32_0 = arith.constant 0 : i32
    %c0_i32_1 = arith.constant 0 : i32
    return %c0_i32, %c0_i32_0 : i32, i32
  }
  func.func @transform_8(%arg0: i32) -> (i32, i32) {
    %c0_i32 = arith.constant 0 : i32
    %c0_i32_0 = arith.constant 0 : i32
    %c0_i32_1 = arith.constant 0 : i32
    return %c0_i32, %c0_i32_0 : i32, i32
  }
  func.func @transform_9(%arg0: i32) -> (i32, i32) {
    %c0_i32 = arith.constant 0 : i32
    %c0_i32_0 = arith.constant 0 : i32
    return %arg0, %c0_i32 : i32, i32
  }
}

</mosaic_0001>

<llo_original>
// kernel: tpu_custom_call.1
$region0: #{tpu_custom_call.1}
  #allocation0 [shape = 'u32[]', space=smem, size = 0x4, offset = 0x4, fixed_abs, tag = 'smem constant byte address 0x4 - core index']
  #allocation1 [shape = 'u32[144,128]{1,0:T(1,128)}', space=vmem, size = 0x12000, scoped, tag = 'internal scratch']
  %s0 = inlined_call_operand.hbm [shape: bf16[2,8,32], index: 0, kind: input, shape index: {}]
  %s1 = inlined_call_operand.vmem [shape: bf16[32,128], index: 1, kind: input, shape index: {}]
  %s2 = inlined_call_operand.hbm [shape: bf16[32,128], index: 2, kind: input, shape index: {}]
  %s3 = inlined_call_operand.vmem [shape: f32[1,128], index: 3, kind: input, shape index: {}]
  %s4 = inlined_call_operand.hbm [shape: bf16[32,128], index: 4, kind: input, shape index: {}]
  %s5 = inlined_call_operand.vmem [shape: bf16[32,128], index: 5, kind: input, shape index: {}]
  %s6 = inlined_call_operand.vmem [shape: f32[1,128], index: 6, kind: input, shape index: {}]
  %s7 = inlined_call_operand.vmem [shape: bf16[32,16], index: 7, kind: input, shape index: {}]
  %s8 = inlined_call_operand.vmem [shape: f32[1,16], index: 8, kind: input, shape index: {}]
  %s9 = inlined_call_operand.hbm [shape: f32[2,16], index: 9, kind: output, shape index: {}]
  %s10 = sld [smem:[#allocation0]]
  $region58: #{tpu_custom_call.1} parent=0
    _
  %s12 = ssub.s32 1, %s10
  %s13 = scalar_select 0, %s12, %s10
  $region1: #{tpu_custom_call.1} parent=0
    #allocation2 [shape = 'u8[4096]{0}', space=vmem, size = 0x1000, scoped, tag = 'input window, operand 0, single buffered']
    #allocation3 [shape = 's32[1]{0}', space=sflag, size = 0x4, scoped, tag = 'scoped memory for tpu_custom_call.1']
    #allocation4 [shape = 's32[1]{0}', space=sflag, size = 0x4, scoped, tag = 'scoped memory for tpu_custom_call.1']
    #allocation5 [shape = 'u8[8192]{0}', space=vmem, size = 0x2000, scoped, tag = 'input window, operand 2, single buffered']
    #allocation6 [shape = 's32[1]{0}', space=sflag, size = 0x4, scoped, tag = 'scoped memory for tpu_custom_call.1']
    #allocation7 [shape = 'u8[8192]{0}', space=vmem, size = 0x2000, scoped, tag = 'input window, operand 4, single buffered']
    #allocation8 [shape = 'u8[1024]{0}', space=vmem, size = 0x400, scoped, tag = 'output window, operand 0, single buffered']
    %14 = vsyncpa [#allocation3], 0
    %15 = vsyncpa [#allocation6], 0
    %16 = vsyncpa [#allocation4], 0
    // Predicated region
    $region2: #{tpu_custom_call.1} parent=1 // pred_check
      _
    $region3: #{tpu_custom_call.1} parent=1 // pred_check_branch
      %18 = sbr.rel (0) target = $region5
    $region4: #{tpu_custom_call.1} parent=1 // pred_region
      %s20 = ssub.s32 128, 128
      %21 = vsyncadd [#allocation3], %s20
      %s22 = sshll.u32 [#allocation2], 4
      %s23 = int_to_ptr.vmem [resolvable:$true] %s22
      %28 = dma.hbm_to_vmem [thread:$0]  %s0, 128, %s23, [#allocation3], 64, 64, 4
    $region5: #{tpu_custom_call.1} parent=1 // pred_fallthru
      _
    // Predicated region
    $region6: #{tpu_custom_call.1} parent=1 // pred_check
      _
    $region7: #{tpu_custom_call.1} parent=1 // pred_check_branch
      %30 = sbr.rel (0) target = $region9
    $region8: #{tpu_custom_call.1} parent=1 // pred_region
      _
    $region9: #{tpu_custom_call.1} parent=1 // pred_fallthru
      _
    // Predicated region
    $region10: #{tpu_custom_call.1} parent=1 // pred_check
      _
    $region11: #{tpu_custom_call.1} parent=1 // pred_check_branch
      %32 = sbr.rel (0) target = $region13
    $region12: #{tpu_custom_call.1} parent=1 // pred_region
      %s34 = ssub.s32 256, 256
      %35 = vsyncadd [#allocation6], %s34
      %s36 = sshll.u32 [#allocation5], 4
      %s37 = int_to_ptr.vmem [resolvable:$true] %s36
      %42 = dma.hbm_to_vmem [thread:$0]  %s2, 256, %s37, [#allocation6], 64, 64, 4
    $region13: #{tpu_custom_call.1} parent=1 // pred_fallthru
      _
    // Predicated region
    $region14: #{tpu_custom_call.1} parent=1 // pred_check
      _
    $region15: #{tpu_custom_call.1} parent=1 // pred_check_branch
      %44 = sbr.rel (0) target = $region17
    $region16: #{tpu_custom_call.1} parent=1 // pred_region
      _
    $region17: #{tpu_custom_call.1} parent=1 // pred_fallthru
      _
    // Predicated region
    $region18: #{tpu_custom_call.1} parent=1 // pred_check
      _
    $region19: #{tpu_custom_call.1} parent=1 // pred_check_branch
      %46 = sbr.rel (0) target = $region21
    $region20: #{tpu_custom_call.1} parent=1 // pred_region
      %s48 = ssub.s32 256, 256
      %49 = vsyncadd [#allocation6], %s48
      %s50 = sshll.u32 [#allocation7], 4
      %s51 = int_to_ptr.vmem [resolvable:$true] %s50
      %56 = dma.hbm_to_vmem [thread:$0]  %s4, 256, %s51, [#allocation6], 64, 64, 4
    $region21: #{tpu_custom_call.1} parent=1 // pred_fallthru
      _
    // Predicated region
    $region22: #{tpu_custom_call.1} parent=1 // pred_check
      _
    $region23: #{tpu_custom_call.1} parent=1 // pred_check_branch
      %58 = sbr.rel (0) target = $region25
    $region24: #{tpu_custom_call.1} parent=1 // pred_region
      _
    $region25: #{tpu_custom_call.1} parent=1 // pred_fallthru
      _
    // Predicated region
    $region26: #{tpu_custom_call.1} parent=1 // pred_check
      _
    $region27: #{tpu_custom_call.1} parent=1 // pred_check_branch
      %60 = sbr.rel (0) target = $region29
    $region28: #{tpu_custom_call.1} parent=1 // pred_region
      _
    $region29: #{tpu_custom_call.1} parent=1 // pred_fallthru
      _
    // Predicated region
    $region30: #{tpu_custom_call.1} parent=1 // pred_check
      _
    $region31: #{tpu_custom_call.1} parent=1 // pred_check_branch
      %62 = sbr.rel (0) target = $region33
    $region32: #{tpu_custom_call.1} parent=1 // pred_region
      _
    $region33: #{tpu_custom_call.1} parent=1 // pred_fallthru
      _
    // Predicated region
    $region34: #{tpu_custom_call.1} parent=1 // pred_check
      _
    $region35: #{tpu_custom_call.1} parent=1 // pred_check_branch
      %64 = sbr.rel (0) target = $region37
    $region36: #{tpu_custom_call.1} parent=1 // pred_region
      _
    $region37: #{tpu_custom_call.1} parent=1 // pred_fallthru
      _
    // Predicated region
    $region38: #{tpu_custom_call.1} parent=1 // pred_check
      _
    $region39: #{tpu_custom_call.1} parent=1 // pred_check_branch
      %66 = sbr.rel (0) target = $region41
    $region40: #{tpu_custom_call.1} parent=1 // pred_region
      %67 = dma.done [#allocation3], 128
    $region41: #{tpu_custom_call.1} parent=1 // pred_fallthru
      _
    // Predicated region
    $region42: #{tpu_custom_call.1} parent=1 // pred_check
      _
    $region43: #{tpu_custom_call.1} parent=1 // pred_check_branch
      %69 = sbr.rel (0) target = $region45
    $region44: #{tpu_custom_call.1} parent=1 // pred_region
      %70 = dma.done [#allocation6], 256
    $region45: #{tpu_custom_call.1} parent=1 // pred_fallthru
      _
    // Predicated region
    $region46: #{tpu_custom_call.1} parent=1 // pred_check
      _
    $region47: #{tpu_custom_call.1} parent=1 // pred_check_branch
      %72 = sbr.rel (0) target = $region49
    $region48: #{tpu_custom_call.1} parent=1 // pred_region
      %73 = dma.done [#allocation6], 256
    $region49: #{tpu_custom_call.1} parent=1 // pred_fallthru
      _
    %v75 = vld [vmem:[%s1] sm:$0xf]
    %v76 = vld [vmem:[%s1 + $0x4] sm:$0xf]
    %v77 = vld [vmem:[%s1 + $0x8] sm:$0xf]
    %v78 = vld [vmem:[%s1 + $0xc] sm:$0xf]
    %v79 = vld [vmem:[#allocation7] sm:$0xf]
    %v80 = vld [vmem:[#allocation7 + $0x4] sm:$0xf]
    %v81 = vld [vmem:[#allocation7 + $0x8] sm:$0xf]
    %v82 = vld [vmem:[#allocation7 + $0xc] sm:$0xf]
    %v83 = vld [vmem:[#allocation5] sm:$0xf]
    %v84 = vld [vmem:[#allocation5 + $0x4] sm:$0xf]
    %v85 = vld [vmem:[#allocation5 + $0x8] sm:$0xf]
    %v86 = vld [vmem:[#allocation5 + $0xc] sm:$0xf]
    %v87 = vld [vmem:[%s5] sm:$0xf]
    %v88 = vld [vmem:[%s5 + $0x4] sm:$0xf]
    %v89 = vld [vmem:[%s5 + $0x8] sm:$0xf]
    %v90 = vld [vmem:[%s5 + $0xc] sm:$0xf]
    %v91 = vld [vmem:[%s3] sm:$0x1]
    %v92 = vld [vmem:[%s6] sm:$0x1]
    %v93 = vld [vmem:[%s7] sm:$0xf]
    %v94 = vld [vmem:[%s7 + $0x4] sm:$0xf]
    %v95 = vld [vmem:[%s7 + $0x8] sm:$0xf]
    %v96 = vld [vmem:[%s7 + $0xc] sm:$0xf]
    %v97 = vld [vmem:[%s8] sm:$0x1]
    %v98 = vlaneseq
    %v99 = vand.u32 %v98, 127
    %vm100 = vcmp.ge.s32.totalorder %v99, 64
    %vm101 = vcmp.lt.s32.totalorder %v99, 96
    %vm102 = vmand %vm100, %vm101
    %v103 = vld [vmem:[#allocation2] sm:$0x1]
    %v104 = vld [vmem:[#allocation2 + $0x4] sm:$0x1]
    %v109 = vunpack.c.l.b16 %v83
    %v110 = vunpack.c.l.b16 %v84
    %v111 = vunpack.c.l.b16 %v85
    %v112 = vunpack.c.l.b16 %v86
    %v113 = vpack.c.b16 %v110, %v109
    %v114 = vpack.c.b16 %v112, %v111
    %vm117 = vcmask 261120
    %v119 = vsel %vm117, 0, 0
    %121 = vmatprep.subr.bf16.mxu0 0
    %122 = vmatpush1.bf16.msra.mxu0 0
    %123 = vmatprep.subr.bf16.mxu0 0
    %124 = vmatpush1.bf16.msra.mxu0 0
    %125 = vmatprep.subr.bf16.mxu0 0
    %126 = vmatpush1.bf16.msra.mxu0 0
    %127 = vmatprep.subr.bf16.mxu0 0
    %128 = vmatpush1.bf16.msra.mxu0 0
    %129 = vmatprep.subr.bf16.mxu0 0
    %130 = vmatpush1.bf16.msra.mxu0 0
    %131 = vmatprep.subr.bf16.mxu0 0
    %132 = vmatpush1.bf16.msra.mxu0 0
    %133 = vmatprep.subr.bf16.mxu0 0
    %134 = vmatpush1.bf16.msra.mxu0 %v114
    %135 = vmatprep.subr.bf16.mxu0 0
    %136 = vmatpush1.bf16.msra.mxu0 %v113
    %137 = vmatprep.subr.bf16.mxu0 0
    %138 = vmatpush2.bf16.msra.mxu0 0
    %139 = vmatprep.subr.bf16.mxu0 0
    %140 = vmatpush2.bf16.msra.mxu0 0
    %141 = vmatprep.subr.bf16.mxu0 0
    %142 = vmatpush2.bf16.msra.mxu0 0
    %143 = vmatprep.subr.bf16.mxu0 0
    %144 = vmatpush2.bf16.msra.mxu0 0
    %145 = vmatprep.subr.bf16.mxu0 0
    %146 = vmatpush2.bf16.msra.mxu0 0
    %147 = vmatprep.subr.bf16.mxu0 0
    %148 = vmatpush2.bf16.msra.mxu0 0
    %149 = vmatprep.subr.bf16.mxu0 0
    %150 = vmatpush2.bf16.msra.mxu0 0
    %151 = vmatprep.subr.bf16.mxu0 0
    %152 = vmatpush2.bf16.msra.mxu0 0
    %153 = vmatprep.mubr.bf16.mxu0 0
    %154 = vmatmul.mubr.bf16.gmra.mxu0 %v119
    %v155 = vpop.f32.mrf.mxu0
    %v156 = vadd.f32 0.0, %v155
    %v157 = vpop.f32.mrf.mxu0
    %v158 = vpop.f32.mrf.mxu0
    %v159 = vpop.f32.mrf.mxu0
    %160 = vdwg.mxu0
    %v163 = vunpack.c.l.b16 %v103
    %v164 = vunpack.c.l.b16 %v104
    %v165 = vpack.c.b16 %v163, %v163
    %v166 = vpack.c.b16 %v164, %v164
    %v167 = vunpack.c.l.b16 %v165
    %v168 = vunpack.c.l.b16 %v166
    %v169 = vrot.slane %v168, 7
    %vm170 = vcmask 1041409
    %v171 = vsel %vm170, %v169, %v167
    %v172 = vpack.c.b16 %v171, %v171
    %v177 = vunpack.c.l.b16 %v75
    %v178 = vunpack.c.l.b16 %v76
    %v179 = vunpack.c.l.b16 %v77
    %v180 = vunpack.c.l.b16 %v78
    %v181 = vpack.c.b16 %v178, %v177
    %v182 = vpack.c.b16 %v180, %v179
    %v186 = vsel %vm117, %v172, 0
    %188 = vmatprep.subr.bf16.mxu0 0
    %189 = vmatpush1.bf16.msra.mxu0 0
    %190 = vmatprep.subr.bf16.mxu0 0
    %191 = vmatpush1.bf16.msra.mxu0 0
    %192 = vmatprep.subr.bf16.mxu0 0
    %193 = vmatpush1.bf16.msra.mxu0 0
    %194 = vmatprep.subr.bf16.mxu0 0
    %195 = vmatpush1.bf16.msra.mxu0 0
    %196 = vmatprep.subr.bf16.mxu0 0
    %197 = vmatpush1.bf16.msra.mxu0 0
    %198 = vmatprep.subr.bf16.mxu0 0
    %199 = vmatpush1.bf16.msra.mxu0 0
    %200 = vmatprep.subr.bf16.mxu0 0
    %201 = vmatpush1.bf16.msra.mxu0 %v182
    %202 = vmatprep.subr.bf16.mxu0 0
    %203 = vmatpush1.bf16.msra.mxu0 %v181
    %204 = vmatprep.subr.bf16.mxu0 0
    %205 = vmatpush2.bf16.msra.mxu0 0
    %206 = vmatprep.subr.bf16.mxu0 0
    %207 = vmatpush2.bf16.msra.mxu0 0
    %208 = vmatprep.subr.bf16.mxu0 0
    %209 = vmatpush2.bf16.msra.mxu0 0
    %210 = vmatprep.subr.bf16.mxu0 0
    %211 = vmatpush2.bf16.msra.mxu0 0
    %212 = vmatprep.subr.bf16.mxu0 0
    %213 = vmatpush2.bf16.msra.mxu0 0
    %214 = vmatprep.subr.bf16.mxu0 0
    %215 = vmatpush2.bf16.msra.mxu0 0
    %216 = vmatprep.subr.bf16.mxu0 0
    %217 = vmatpush2.bf16.msra.mxu0 0
    %218 = vmatprep.subr.bf16.mxu0 0
    %219 = vmatpush2.bf16.msra.mxu0 0
    %220 = vmatprep.mubr.bf16.mxu0 0
    %221 = vmatmul.mubr.bf16.gmra.mxu0 %v186
    %v222 = vpop.f32.mrf.mxu0
    %v223 = vadd.f32 %v156, %v222
    %v224 = vpop.f32.mrf.mxu0
    %v225 = vpop.f32.mrf.mxu0
    %v226 = vpop.f32.mrf.mxu0
    %227 = vdwg.mxu0
    %v229 = vlaneseq
    %v230 = vshrl.u32 %v229, 7
    %v231 = vsub.s32 0, %v230
    %v232 = vrot.slane %v91, %v231
    %v234 = vadd.f32 %v223, %v232
    %v235 = vmul.f32 %v234, 2.0
    %v236 = vsel %vm102, %v235, %v234
    %v237 = vxor.u32 %v236, 2147483648
    %v238 = vmul.f32 %v237, 1.442695
    %v239 = vpow.pop %v238
    %v240 = vadd.f32 %v239, 1.0
    %v241 = vrcp.pop %v240
    %v242 = vmul.f32 1.0, %v241
    %v243 = vmul.f32 %v242, 2.0
    %v244 = vsub.f32 %v243, 1.0
    %v245 = vsel %vm102, %v244, %v242
    %v246 = vmul.f32 %v245, 0.0
    %248 = vrot.lane.b32.xlu0 %v245, 64
    %v249 = vpop.permute.xlu0 %248
    %v251 = vmul.f32 %v245, %v249
    %253 = vrot.lane.b32.xlu0 %v251, 32
    %v254 = vpop.permute.xlu0 %253
    %v256 = vadd.f32 %v246, %v254
    %v257 = vtanh.pop %v256
    %259 = vrot.lane.b32.xlu0 %v257, 64
    %v260 = vpop.permute.xlu0 %259
    %v262 = vmul.f32 %v245, %v260
    %v263 = vpack.c.bf16 %v262, %v262
    %v268 = vunpack.c.l.b16 %v87
    %v269 = vunpack.c.l.b16 %v88
    %v270 = vunpack.c.l.b16 %v89
    %v271 = vunpack.c.l.b16 %v90
    %v272 = vpack.c.b16 %v269, %v268
    %v273 = vpack.c.b16 %v271, %v270
    %276 = vmatprep.subr.bf16.mxu0 0
    %277 = vmatpush1.bf16.msra.mxu0 0
    %278 = vmatprep.subr.bf16.mxu0 0
    %279 = vmatpush1.bf16.msra.mxu0 0
    %280 = vmatprep.subr.bf16.mxu0 0
    %281 = vmatpush1.bf16.msra.mxu0 0
    %282 = vmatprep.subr.bf16.mxu0 0
    %283 = vmatpush1.bf16.msra.mxu0 0
    %284 = vmatprep.subr.bf16.mxu0 0
    %285 = vmatpush1.bf16.msra.mxu0 0
    %286 = vmatprep.subr.bf16.mxu0 0
    %287 = vmatpush1.bf16.msra.mxu0 0
    %288 = vmatprep.subr.bf16.mxu0 0
    %289 = vmatpush1.bf16.msra.mxu0 %v273
    %290 = vmatprep.subr.bf16.mxu0 0
    %291 = vmatpush1.bf16.msra.mxu0 %v272
    %292 = vmatprep.subr.bf16.mxu0 0
    %293 = vmatpush2.bf16.msra.mxu0 0
    %294 = vmatprep.subr.bf16.mxu0 0
    %295 = vmatpush2.bf16.msra.mxu0 0
    %296 = vmatprep.subr.bf16.mxu0 0
    %297 = vmatpush2.bf16.msra.mxu0 0
    %298 = vmatprep.subr.bf16.mxu0 0
    %299 = vmatpush2.bf16.msra.mxu0 0
    %300 = vmatprep.subr.bf16.mxu0 0
    %301 = vmatpush2.bf16.msra.mxu0 0
    %302 = vmatprep.subr.bf16.mxu0 0
    %303 = vmatpush2.bf16.msra.mxu0 0
    %304 = vmatprep.subr.bf16.mxu0 0
    %305 = vmatpush2.bf16.msra.mxu0 0
    %306 = vmatprep.subr.bf16.mxu0 0
    %307 = vmatpush2.bf16.msra.mxu0 0
    %308 = vmatprep.mubr.bf16.mxu0 0
    %309 = vmatmul.mubr.bf16.gmra.mxu0 %v119
    %v310 = vpop.f32.mrf.mxu0
    %v311 = vadd.f32 0.0, %v310
    %v312 = vpop.f32.mrf.mxu0
    %v313 = vpop.f32.mrf.mxu0
    %v314 = vpop.f32.mrf.mxu0
    %315 = vdwg.mxu0
    %317 = vrot.lane.b32.xlu0 %v263, 32
    %v318 = vpop.permute.xlu0 %317
    %v323 = vunpack.c.l.b16 %v79
    %v324 = vunpack.c.l.b16 %v80
    %v325 = vunpack.c.l.b16 %v81
    %v326 = vunpack.c.l.b16 %v82
    %v327 = vpack.c.b16 %v324, %v323
    %v328 = vpack.c.b16 %v326, %v325
    %v332 = vsel %vm117, %v318, 0
    %334 = vmatprep.subr.bf16.mxu0 0
    %335 = vmatpush1.bf16.msra.mxu0 0
    %336 = vmatprep.subr.bf16.mxu0 0
    %337 = vmatpush1.bf16.msra.mxu0 0
    %338 = vmatprep.subr.bf16.mxu0 0
    %339 = vmatpush1.bf16.msra.mxu0 0
    %340 = vmatprep.subr.bf16.mxu0 0
    %341 = vmatpush1.bf16.msra.mxu0 0
    %342 = vmatprep.subr.bf16.mxu0 0
    %343 = vmatpush1.bf16.msra.mxu0 0
    %344 = vmatprep.subr.bf16.mxu0 0
    %345 = vmatpush1.bf16.msra.mxu0 0
    %346 = vmatprep.subr.bf16.mxu0 0
    %347 = vmatpush1.bf16.msra.mxu0 %v328
    %348 = vmatprep.subr.bf16.mxu0 0
    %349 = vmatpush1.bf16.msra.mxu0 %v327
    %350 = vmatprep.subr.bf16.mxu0 0
    %351 = vmatpush2.bf16.msra.mxu0 0
    %352 = vmatprep.subr.bf16.mxu0 0
    %353 = vmatpush2.bf16.msra.mxu0 0
    %354 = vmatprep.subr.bf16.mxu0 0
    %355 = vmatpush2.bf16.msra.mxu0 0
    %356 = vmatprep.subr.bf16.mxu0 0
    %357 = vmatpush2.bf16.msra.mxu0 0
    %358 = vmatprep.subr.bf16.mxu0 0
    %359 = vmatpush2.bf16.msra.mxu0 0
    %360 = vmatprep.subr.bf16.mxu0 0
    %361 = vmatpush2.bf16.msra.mxu0 0
    %362 = vmatprep.subr.bf16.mxu0 0
    %363 = vmatpush2.bf16.msra.mxu0 0
    %364 = vmatprep.subr.bf16.mxu0 0
    %365 = vmatpush2.bf16.msra.mxu0 0
    %366 = vmatprep.mubr.bf16.mxu0 0
    %367 = vmatmul.mubr.bf16.gmra.mxu0 %v332
    %v368 = vpop.f32.mrf.mxu0
    %v369 = vadd.f32 %v311, %v368
    %v370 = vpop.f32.mrf.mxu0
    %v371 = vpop.f32.mrf.mxu0
    %v372 = vpop.f32.mrf.mxu0
    %373 = vdwg.mxu0
    %v375 = vlaneseq
    %v376 = vshrl.u32 %v375, 7
    %v377 = vsub.s32 0, %v376
    %v378 = vrot.slane %v92, %v377
    %v380 = vadd.f32 %v369, %v378
    %v381 = vmul.f32 %v380, 2.0
    %v382 = vsel %vm102, %v381, %v380
    %v383 = vxor.u32 %v382, 2147483648
    %v384 = vmul.f32 %v383, 1.442695
    %v385 = vpow.pop %v384
    %v386 = vadd.f32 %v385, 1.0
    %v387 = vrcp.pop %v386
    %v388 = vmul.f32 1.0, %v387
    %v389 = vmul.f32 %v388, 2.0
    %v390 = vsub.f32 %v389, 1.0
    %v391 = vsel %vm102, %v390, %v388
    %v392 = vmul.f32 %v391, 0.0
    %394 = vrot.lane.b32.xlu0 %v391, 64
    %v395 = vpop.permute.xlu0 %394
    %v397 = vmul.f32 %v391, %v395
    %399 = vrot.lane.b32.xlu0 %v397, 32
    %v400 = vpop.permute.xlu0 %399
    %v402 = vadd.f32 %v392, %v400
    %v403 = vtanh.pop %v402
    %405 = vrot.lane.b32.xlu0 %v403, 64
    %v406 = vpop.permute.xlu0 %405
    %v408 = vmul.f32 %v391, %v406
    %v409 = vpack.c.bf16 %v408, %v408
    %410 = vmatprep.subr.bf16.mxu0 0
    %411 = vmatpush1.bf16.msra.mxu0 0
    %412 = vmatprep.subr.bf16.mxu0 0
    %413 = vmatpush1.bf16.msra.mxu0 0
    %414 = vmatprep.subr.bf16.mxu0 0
    %415 = vmatpush1.bf16.msra.mxu0 0
    %416 = vmatprep.subr.bf16.mxu0 0
    %417 = vmatpush1.bf16.msra.mxu0 0
    %418 = vmatprep.subr.bf16.mxu0 0
    %419 = vmatpush1.bf16.msra.mxu0 0
    %420 = vmatprep.subr.bf16.mxu0 0
    %421 = vmatpush1.bf16.msra.mxu0 0
    %422 = vmatprep.subr.bf16.mxu0 0
    %423 = vmatpush1.bf16.msra.mxu0 %v114
    %424 = vmatprep.subr.bf16.mxu0 0
    %425 = vmatpush1.bf16.msra.mxu0 %v113
    %426 = vmatprep.subr.bf16.mxu0 0
    %427 = vmatpush2.bf16.msra.mxu0 0
    %428 = vmatprep.subr.bf16.mxu0 0
    %429 = vmatpush2.bf16.msra.mxu0 0
    %430 = vmatprep.subr.bf16.mxu0 0
    %431 = vmatpush2.bf16.msra.mxu0 0
    %432 = vmatprep.subr.bf16.mxu0 0
    %433 = vmatpush2.bf16.msra.mxu0 0
    %434 = vmatprep.subr.bf16.mxu0 0
    %435 = vmatpush2.bf16.msra.mxu0 0
    %436 = vmatprep.subr.bf16.mxu0 0
    %437 = vmatpush2.bf16.msra.mxu0 0
    %438 = vmatprep.subr.bf16.mxu0 0
    %439 = vmatpush2.bf16.msra.mxu0 0
    %440 = vmatprep.subr.bf16.mxu0 0
    %441 = vmatpush2.bf16.msra.mxu0 0
    %442 = vmatprep.mubr.bf16.mxu0 0
    %443 = vmatmul.mubr.bf16.gmra.mxu0 %v332
    %v444 = vpop.f32.mrf.mxu0
    %v445 = vadd.f32 0.0, %v444
    %v446 = vpop.f32.mrf.mxu0
    %v447 = vpop.f32.mrf.mxu0
    %v448 = vpop.f32.mrf.mxu0
    %449 = vdwg.mxu0
    %v450 = vrot.slane %v167, 1
    %v451 = vsel %vm170, %v168, %v450
    %v452 = vpack.c.b16 %v451, %v451
    %v454 = vsel %vm117, %v452, 0
    %456 = vmatprep.subr.bf16.mxu0 0
    %457 = vmatpush1.bf16.msra.mxu0 0
    %458 = vmatprep.subr.bf16.mxu0 0
    %459 = vmatpush1.bf16.msra.mxu0 0
    %460 = vmatprep.subr.bf16.mxu0 0
    %461 = vmatpush1.bf16.msra.mxu0 0
    %462 = vmatprep.subr.bf16.mxu0 0
    %463 = vmatpush1.bf16.msra.mxu0 0
    %464 = vmatprep.subr.bf16.mxu0 0
    %465 = vmatpush1.bf16.msra.mxu0 0
    %466 = vmatprep.subr.bf16.mxu0 0
    %467 = vmatpush1.bf16.msra.mxu0 0
    %468 = vmatprep.subr.bf16.mxu0 0
    %469 = vmatpush1.bf16.msra.mxu0 %v182
    %470 = vmatprep.subr.bf16.mxu0 0
    %471 = vmatpush1.bf16.msra.mxu0 %v181
    %472 = vmatprep.subr.bf16.mxu0 0
    %473 = vmatpush2.bf16.msra.mxu0 0
    %474 = vmatprep.subr.bf16.mxu0 0
    %475 = vmatpush2.bf16.msra.mxu0 0
    %476 = vmatprep.subr.bf16.mxu0 0
    %477 = vmatpush2.bf16.msra.mxu0 0
    %478 = vmatprep.subr.bf16.mxu0 0
    %479 = vmatpush2.bf16.msra.mxu0 0
    %480 = vmatprep.subr.bf16.mxu0 0
    %481 = vmatpush2.bf16.msra.mxu0 0
    %482 = vmatprep.subr.bf16.mxu0 0
    %483 = vmatpush2.bf16.msra.mxu0 0
    %484 = vmatprep.subr.bf16.mxu0 0
    %485 = vmatpush2.bf16.msra.mxu0 0
    %486 = vmatprep.subr.bf16.mxu0 0
    %487 = vmatpush2.bf16.msra.mxu0 0
    %488 = vmatprep.mubr.bf16.mxu0 0
    %489 = vmatmul.mubr.bf16.gmra.mxu0 %v454
    %v490 = vpop.f32.mrf.mxu0
    %v491 = vadd.f32 %v445, %v490
    %v492 = vpop.f32.mrf.mxu0
    %v493 = vpop.f32.mrf.mxu0
    %v494 = vpop.f32.mrf.mxu0
    %495 = vdwg.mxu0
    %v496 = vadd.f32 %v491, %v232
    %v497 = vmul.f32 %v496, 2.0
    %v498 = vsel %vm102, %v497, %v496
    %v499 = vxor.u32 %v498, 2147483648
    %v500 = vmul.f32 %v499, 1.442695
    %v501 = vpow.pop %v500
    %v502 = vadd.f32 %v501, 1.0
    %v503 = vrcp.pop %v502
    %v504 = vmul.f32 1.0, %v503
    %v505 = vmul.f32 %v504, 2.0
    %v506 = vsub.f32 %v505, 1.0
    %v507 = vsel %vm102, %v506, %v504
    %v508 = vmul.f32 %v507, %v256
    %510 = vrot.lane.b32.xlu0 %v507, 64
    %v511 = vpop.permute.xlu0 %510
    %v513 = vmul.f32 %v507, %v511
    %515 = vrot.lane.b32.xlu0 %v513, 32
    %v516 = vpop.permute.xlu0 %515
    %v518 = vadd.f32 %v508, %v516
    %v519 = vtanh.pop %v518
    %521 = vrot.lane.b32.xlu0 %v519, 64
    %v522 = vpop.permute.xlu0 %521
    %v524 = vmul.f32 %v507, %v522
    %v525 = vpack.c.bf16 %v524, %v524
    %527 = vrot.lane.b32.xlu0 %v409, 32
    %v528 = vpop.permute.xlu0 %527
    %v530 = vsel %vm117, %v528, 0
    %532 = vmatprep.subr.bf16.mxu0 0
    %533 = vmatpush1.bf16.msra.mxu0 0
    %534 = vmatprep.subr.bf16.mxu0 0
    %535 = vmatpush1.bf16.msra.mxu0 0
    %536 = vmatprep.subr.bf16.mxu0 0
    %537 = vmatpush1.bf16.msra.mxu0 0
    %538 = vmatprep.subr.bf16.mxu0 0
    %539 = vmatpush1.bf16.msra.mxu0 0
    %540 = vmatprep.subr.bf16.mxu0 0
    %541 = vmatpush1.bf16.msra.mxu0 0
    %542 = vmatprep.subr.bf16.mxu0 0
    %543 = vmatpush1.bf16.msra.mxu0 0
    %544 = vmatprep.subr.bf16.mxu0 0
    %545 = vmatpush1.bf16.msra.mxu0 %v273
    %546 = vmatprep.subr.bf16.mxu0 0
    %547 = vmatpush1.bf16.msra.mxu0 %v272
    %548 = vmatprep.subr.bf16.mxu0 0
    %549 = vmatpush2.bf16.msra.mxu0 0
    %550 = vmatprep.subr.bf16.mxu0 0
    %551 = vmatpush2.bf16.msra.mxu0 0
    %552 = vmatprep.subr.bf16.mxu0 0
    %553 = vmatpush2.bf16.msra.mxu0 0
    %554 = vmatprep.subr.bf16.mxu0 0
    %555 = vmatpush2.bf16.msra.mxu0 0
    %556 = vmatprep.subr.bf16.mxu0 0
    %557 = vmatpush2.bf16.msra.mxu0 0
    %558 = vmatprep.subr.bf16.mxu0 0
    %559 = vmatpush2.bf16.msra.mxu0 0
    %560 = vmatprep.subr.bf16.mxu0 0
    %561 = vmatpush2.bf16.msra.mxu0 0
    %562 = vmatprep.subr.bf16.mxu0 0
    %563 = vmatpush2.bf16.msra.mxu0 0
    %564 = vmatprep.mubr.bf16.mxu0 0
    %565 = vmatmul.mubr.bf16.gmra.mxu0 %v530
    %v566 = vpop.f32.mrf.mxu0
    %v567 = vadd.f32 0.0, %v566
    %v568 = vpop.f32.mrf.mxu0
    %v569 = vpop.f32.mrf.mxu0
    %v570 = vpop.f32.mrf.mxu0
    %571 = vdwg.mxu0
    %573 = vrot.lane.b32.xlu0 %v525, 32
    %v574 = vpop.permute.xlu0 %573
    %v576 = vsel %vm117, %v574, 0
    %578 = vmatprep.subr.bf16.mxu0 0
    %579 = vmatpush1.bf16.msra.mxu0 0
    %580 = vmatprep.subr.bf16.mxu0 0
    %581 = vmatpush1.bf16.msra.mxu0 0
    %582 = vmatprep.subr.bf16.mxu0 0
    %583 = vmatpush1.bf16.msra.mxu0 0
    %584 = vmatprep.subr.bf16.mxu0 0
    %585 = vmatpush1.bf16.msra.mxu0 0
    %586 = vmatprep.subr.bf16.mxu0 0
    %587 = vmatpush1.bf16.msra.mxu0 0
    %588 = vmatprep.subr.bf16.mxu0 0
    %589 = vmatpush1.bf16.msra.mxu0 0
    %590 = vmatprep.subr.bf16.mxu0 0
    %591 = vmatpush1.bf16.msra.mxu0 %v328
    %592 = vmatprep.subr.bf16.mxu0 0
    %593 = vmatpush1.bf16.msra.mxu0 %v327
    %594 = vmatprep.subr.bf16.mxu0 0
    %595 = vmatpush2.bf16.msra.mxu0 0
    %596 = vmatprep.subr.bf16.mxu0 0
    %597 = vmatpush2.bf16.msra.mxu0 0
    %598 = vmatprep.subr.bf16.mxu0 0
    %599 = vmatpush2.bf16.msra.mxu0 0
    %600 = vmatprep.subr.bf16.mxu0 0
    %601 = vmatpush2.bf16.msra.mxu0 0
    %602 = vmatprep.subr.bf16.mxu0 0
    %603 = vmatpush2.bf16.msra.mxu0 0
    %604 = vmatprep.subr.bf16.mxu0 0
    %605 = vmatpush2.bf16.msra.mxu0 0
    %606 = vmatprep.subr.bf16.mxu0 0
    %607 = vmatpush2.bf16.msra.mxu0 0
    %608 = vmatprep.subr.bf16.mxu0 0
    %609 = vmatpush2.bf16.msra.mxu0 0
    %610 = vmatprep.mubr.bf16.mxu0 0
    %611 = vmatmul.mubr.bf16.gmra.mxu0 %v576
    %v612 = vpop.f32.mrf.mxu0
    %v613 = vadd.f32 %v567, %v612
    %v614 = vpop.f32.mrf.mxu0
    %v615 = vpop.f32.mrf.mxu0
    %v616 = vpop.f32.mrf.mxu0
    %617 = vdwg.mxu0
    %v618 = vadd.f32 %v613, %v378
    %v619 = vmul.f32 %v618, 2.0
    %v620 = vsel %vm102, %v619, %v618
    %v621 = vxor.u32 %v620, 2147483648
    %v622 = vmul.f32 %v621, 1.442695
    %v623 = vpow.pop %v622
    %v624 = vadd.f32 %v623, 1.0
    %v625 = vrcp.pop %v624
    %v626 = vmul.f32 1.0, %v625
    %v627 = vmul.f32 %v626, 2.0
    %v628 = vsub.f32 %v627, 1.0
    %v629 = vsel %vm102, %v628, %v626
    %v630 = vmul.f32 %v629, %v402
    %632 = vrot.lane.b32.xlu0 %v629, 64
    %v633 = vpop.permute.xlu0 %632
    %v635 = vmul.f32 %v629, %v633
    %637 = vrot.lane.b32.xlu0 %v635, 32
    %v638 = vpop.permute.xlu0 %637
    %v640 = vadd.f32 %v630, %v638
    %v641 = vtanh.pop %v640
    %643 = vrot.lane.b32.xlu0 %v641, 64
    %v644 = vpop.permute.xlu0 %643
    %v646 = vmul.f32 %v629, %v644
    %v647 = vpack.c.bf16 %v646, %v646
    %v648 = vld [vmem:[#allocation2] sm:$0x2]
    %v649 = vld [vmem:[#allocation2 + $0x4] sm:$0x2]
    %650 = vmatprep.subr.bf16.mxu0 0
    %651 = vmatpush1.bf16.msra.mxu0 0
    %652 = vmatprep.subr.bf16.mxu0 0
    %653 = vmatpush1.bf16.msra.mxu0 0
    %654 = vmatprep.subr.bf16.mxu0 0
    %655 = vmatpush1.bf16.msra.mxu0 0
    %656 = vmatprep.subr.bf16.mxu0 0
    %657 = vmatpush1.bf16.msra.mxu0 0
    %658 = vmatprep.subr.bf16.mxu0 0
    %659 = vmatpush1.bf16.msra.mxu0 0
    %660 = vmatprep.subr.bf16.mxu0 0
    %661 = vmatpush1.bf16.msra.mxu0 0
    %662 = vmatprep.subr.bf16.mxu0 0
    %663 = vmatpush1.bf16.msra.mxu0 %v114
    %664 = vmatprep.subr.bf16.mxu0 0
    %665 = vmatpush1.bf16.msra.mxu0 %v113
    %666 = vmatprep.subr.bf16.mxu0 0
    %667 = vmatpush2.bf16.msra.mxu0 0
    %668 = vmatprep.subr.bf16.mxu0 0
    %669 = vmatpush2.bf16.msra.mxu0 0
    %670 = vmatprep.subr.bf16.mxu0 0
    %671 = vmatpush2.bf16.msra.mxu0 0
    %672 = vmatprep.subr.bf16.mxu0 0
    %673 = vmatpush2.bf16.msra.mxu0 0
    %674 = vmatprep.subr.bf16.mxu0 0
    %675 = vmatpush2.bf16.msra.mxu0 0
    %676 = vmatprep.subr.bf16.mxu0 0
    %677 = vmatpush2.bf16.msra.mxu0 0
    %678 = vmatprep.subr.bf16.mxu0 0
    %679 = vmatpush2.bf16.msra.mxu0 0
    %680 = vmatprep.subr.bf16.mxu0 0
    %681 = vmatpush2.bf16.msra.mxu0 0
    %682 = vmatprep.mubr.bf16.mxu0 0
    %683 = vmatmul.mubr.bf16.gmra.mxu0 %v576
    %v684 = vpop.f32.mrf.mxu0
    %v685 = vadd.f32 0.0, %v684
    %v686 = vpop.f32.mrf.mxu0
    %v687 = vpop.f32.mrf.mxu0
    %v688 = vpop.f32.mrf.mxu0
    %689 = vdwg.mxu0
    %v692 = vunpack.c.l.b16 %v648
    %v693 = vunpack.c.l.b16 %v649
    %v694 = vpack.c.b16 %v692, %v692
    %v695 = vpack.c.b16 %v693, %v693
    %v696 = vunpack.c.l.b16 %v694
    %v697 = vunpack.c.l.b16 %v695
    %v698 = vrot.slane %v696, 2
    %v699 = vrot.slane %v697, 1
    %v700 = vsel %vm170, %v699, %v698
    %v701 = vpack.c.b16 %v700, %v700
    %v703 = vsel %vm117, %v701, 0
    %705 = vmatprep.subr.bf16.mxu0 0
    %706 = vmatpush1.bf16.msra.mxu0 0
    %707 = vmatprep.subr.bf16.mxu0 0
    %708 = vmatpush1.bf16.msra.mxu0 0
    %709 = vmatprep.subr.bf16.mxu0 0
    %710 = vmatpush1.bf16.msra.mxu0 0
    %711 = vmatprep.subr.bf16.mxu0 0
    %712 = vmatpush1.bf16.msra.mxu0 0
    %713 = vmatprep.subr.bf16.mxu0 0
    %714 = vmatpush1.bf16.msra.mxu0 0
    %715 = vmatprep.subr.bf16.mxu0 0
    %716 = vmatpush1.bf16.msra.mxu0 0
    %717 = vmatprep.subr.bf16.mxu0 0
    %718 = vmatpush1.bf16.msra.mxu0 %v182
    %719 = vmatprep.subr.bf16.mxu0 0
    %720 = vmatpush1.bf16.msra.mxu0 %v181
    %721 = vmatprep.subr.bf16.mxu0 0
    %722 = vmatpush2.bf16.msra.mxu0 0
    %723 = vmatprep.subr.bf16.mxu0 0
    %724 = vmatpush2.bf16.msra.mxu0 0
    %725 = vmatprep.subr.bf16.mxu0 0
    %726 = vmatpush2.bf16.msra.mxu0 0
    %727 = vmatprep.subr.bf16.mxu0 0
    %728 = vmatpush2.bf16.msra.mxu0 0
    %729 = vmatprep.subr.bf16.mxu0 0
    %730 = vmatpush2.bf16.msra.mxu0 0
    %731 = vmatprep.subr.bf16.mxu0 0
    %732 = vmatpush2.bf16.msra.mxu0 0
    %733 = vmatprep.subr.bf16.mxu0 0
    %734 = vmatpush2.bf16.msra.mxu0 0
    %735 = vmatprep.subr.bf16.mxu0 0
    %736 = vmatpush2.bf16.msra.mxu0 0
    %737 = vmatprep.mubr.bf16.mxu0 0
    %738 = vmatmul.mubr.bf16.gmra.mxu0 %v703
    %v739 = vpop.f32.mrf.mxu0
    %v740 = vadd.f32 %v685, %v739
    %v741 = vpop.f32.mrf.mxu0
    %v742 = vpop.f32.mrf.mxu0
    %v743 = vpop.f32.mrf.mxu0
    %744 = vdwg.mxu0
    %v745 = vadd.f32 %v740, %v232
    %v746 = vmul.f32 %v745, 2.0
    %v747 = vsel %vm102, %v746, %v745
    %v748 = vxor.u32 %v747, 2147483648
    %v749 = vmul.f32 %v748, 1.442695
    %v750 = vpow.pop %v749
    %v751 = vadd.f32 %v750, 1.0
    %v752 = vrcp.pop %v751
    %v753 = vmul.f32 1.0, %v752
    %v754 = vmul.f32 %v753, 2.0
    %v755 = vsub.f32 %v754, 1.0
    %v756 = vsel %vm102, %v755, %v753
    %v757 = vmul.f32 %v756, %v518
    %759 = vrot.lane.b32.xlu0 %v756, 64
    %v760 = vpop.permute.xlu0 %759
    %v762 = vmul.f32 %v756, %v760
    %764 = vrot.lane.b32.xlu0 %v762, 32
    %v765 = vpop.permute.xlu0 %764
    %v767 = vadd.f32 %v757, %v765
    %v768 = vtanh.pop %v767
    %770 = vrot.lane.b32.xlu0 %v768, 64
    %v771 = vpop.permute.xlu0 %770
    %v773 = vmul.f32 %v756, %v771
    %v774 = vpack.c.bf16 %v773, %v773
    %776 = vrot.lane.b32.xlu0 %v647, 32
    %v777 = vpop.permute.xlu0 %776
    %v779 = vsel %vm117, %v777, 0
    %781 = vmatprep.subr.bf16.mxu0 0
    %782 = vmatpush1.bf16.msra.mxu0 0
    %783 = vmatprep.subr.bf16.mxu0 0
    %784 = vmatpush1.bf16.msra.mxu0 0
    %785 = vmatprep.subr.bf16.mxu0 0
    %786 = vmatpush1.bf16.msra.mxu0 0
    %787 = vmatprep.subr.bf16.mxu0 0
    %788 = vmatpush1.bf16.msra.mxu0 0
    %789 = vmatprep.subr.bf16.mxu0 0
    %790 = vmatpush1.bf16.msra.mxu0 0
    %791 = vmatprep.subr.bf16.mxu0 0
    %792 = vmatpush1.bf16.msra.mxu0 0
    %793 = vmatprep.subr.bf16.mxu0 0
    %794 = vmatpush1.bf16.msra.mxu0 %v273
    %795 = vmatprep.subr.bf16.mxu0 0
    %796 = vmatpush1.bf16.msra.mxu0 %v272
    %797 = vmatprep.subr.bf16.mxu0 0
    %798 = vmatpush2.bf16.msra.mxu0 0
    %799 = vmatprep.subr.bf16.mxu0 0
    %800 = vmatpush2.bf16.msra.mxu0 0
    %801 = vmatprep.subr.bf16.mxu0 0
    %802 = vmatpush2.bf16.msra.mxu0 0
    %803 = vmatprep.subr.bf16.mxu0 0
    %804 = vmatpush2.bf16.msra.mxu0 0
    %805 = vmatprep.subr.bf16.mxu0 0
    %806 = vmatpush2.bf16.msra.mxu0 0
    %807 = vmatprep.subr.bf16.mxu0 0
    %808 = vmatpush2.bf16.msra.mxu0 0
    %809 = vmatprep.subr.bf16.mxu0 0
    %810 = vmatpush2.bf16.msra.mxu0 0
    %811 = vmatprep.subr.bf16.mxu0 0
    %812 = vmatpush2.bf16.msra.mxu0 0
    %813 = vmatprep.mubr.bf16.mxu0 0
    %814 = vmatmul.mubr.bf16.gmra.mxu0 %v779
    %v815 = vpop.f32.mrf.mxu0
    %v816 = vadd.f32 0.0, %v815
    %v817 = vpop.f32.mrf.mxu0
    %v818 = vpop.f32.mrf.mxu0
    %v819 = vpop.f32.mrf.mxu0
    %820 = vdwg.mxu0
    %822 = vrot.lane.b32.xlu0 %v774, 32
    %v823 = vpop.permute.xlu0 %822
    %v825 = vsel %vm117, %v823, 0
    %827 = vmatprep.subr.bf16.mxu0 0
    %828 = vmatpush1.bf16.msra.mxu0 0
    %829 = vmatprep.subr.bf16.mxu0 0
    %830 = vmatpush1.bf16.msra.mxu0 0
    %831 = vmatprep.subr.bf16.mxu0 0
    %832 = vmatpush1.bf16.msra.mxu0 0
    %833 = vmatprep.subr.bf16.mxu0 0
    %834 = vmatpush1.bf16.msra.mxu0 0
    %835 = vmatprep.subr.bf16.mxu0 0
    %836 = vmatpush1.bf16.msra.mxu0 0
    %837 = vmatprep.subr.bf16.mxu0 0
    %838 = vmatpush1.bf16.msra.mxu0 0
    %839 = vmatprep.subr.bf16.mxu0 0
    %840 = vmatpush1.bf16.msra.mxu0 %v328
    %841 = vmatprep.subr.bf16.mxu0 0
    %842 = vmatpush1.bf16.msra.mxu0 %v327
    %843 = vmatprep.subr.bf16.mxu0 0
    %844 = vmatpush2.bf16.msra.mxu0 0
    %845 = vmatprep.subr.bf16.mxu0 0
    %846 = vmatpush2.bf16.msra.mxu0 0
    %847 = vmatprep.subr.bf16.mxu0 0
    %848 = vmatpush2.bf16.msra.mxu0 0
    %849 = vmatprep.subr.bf16.mxu0 0
    %850 = vmatpush2.bf16.msra.mxu0 0
    %851 = vmatprep.subr.bf16.mxu0 0
    %852 = vmatpush2.bf16.msra.mxu0 0
    %853 = vmatprep.subr.bf16.mxu0 0
    %854 = vmatpush2.bf16.msra.mxu0 0
    %855 = vmatprep.subr.bf16.mxu0 0
    %856 = vmatpush2.bf16.msra.mxu0 0
    %857 = vmatprep.subr.bf16.mxu0 0
    %858 = vmatpush2.bf16.msra.mxu0 0
    %859 = vmatprep.mubr.bf16.mxu0 0
    %860 = vmatmul.mubr.bf16.gmra.mxu0 %v825
    %v861 = vpop.f32.mrf.mxu0
    %v862 = vadd.f32 %v816, %v861
    %v863 = vpop.f32.mrf.mxu0
    %v864 = vpop.f32.mrf.mxu0
    %v865 = vpop.f32.mrf.mxu0
    %866 = vdwg.mxu0
    %v867 = vadd.f32 %v862, %v378
    %v868 = vmul.f32 %v867, 2.0
    %v869 = vsel %vm102, %v868, %v867
    %v870 = vxor.u32 %v869, 2147483648
    %v871 = vmul.f32 %v870, 1.442695
    %v872 = vpow.pop %v871
    %v873 = vadd.f32 %v872, 1.0
    %v874 = vrcp.pop %v873
    %v875 = vmul.f32 1.0, %v874
    %v876 = vmul.f32 %v875, 2.0
    %v877 = vsub.f32 %v876, 1.0
    %v878 = vsel %vm102, %v877, %v875
    %v879 = vmul.f32 %v878, %v640
    %881 = vrot.lane.b32.xlu0 %v878, 64
    %v882 = vpop.permute.xlu0 %881
    %v884 = vmul.f32 %v878, %v882
    %886 = vrot.lane.b32.xlu0 %v884, 32
    %v887 = vpop.permute.xlu0 %886
    %v889 = vadd.f32 %v879, %v887
    %v890 = vtanh.pop %v889
    %892 = vrot.lane.b32.xlu0 %v890, 64
    %v893 = vpop.permute.xlu0 %892
    %v895 = vmul.f32 %v878, %v893
    %v896 = vpack.c.bf16 %v895, %v895
    %897 = vmatprep.subr.bf16.mxu0 0
    %898 = vmatpush1.bf16.msra.mxu0 0
    %899 = vmatprep.subr.bf16.mxu0 0
    %900 = vmatpush1.bf16.msra.mxu0 0
    %901 = vmatprep.subr.bf16.mxu0 0
    %902 = vmatpush1.bf16.msra.mxu0 0
    %903 = vmatprep.subr.bf16.mxu0 0
    %904 = vmatpush1.bf16.msra.mxu0 0
    %905 = vmatprep.subr.bf16.mxu0 0
    %906 = vmatpush1.bf16.msra.mxu0 0
    %907 = vmatprep.subr.bf16.mxu0 0
    %908 = vmatpush1.bf16.msra.mxu0 0
    %909 = vmatprep.subr.bf16.mxu0 0
    %910 = vmatpush1.bf16.msra.mxu0 %v114
    %911 = vmatprep.subr.bf16.mxu0 0
    %912 = vmatpush1.bf16.msra.mxu0 %v113
    %913 = vmatprep.subr.bf16.mxu0 0
    %914 = vmatpush2.bf16.msra.mxu0 0
    %915 = vmatprep.subr.bf16.mxu0 0
    %916 = vmatpush2.bf16.msra.mxu0 0
    %917 = vmatprep.subr.bf16.mxu0 0
    %918 = vmatpush2.bf16.msra.mxu0 0
    %919 = vmatprep.subr.bf16.mxu0 0
    %920 = vmatpush2.bf16.msra.mxu0 0
    %921 = vmatprep.subr.bf16.mxu0 0
    %922 = vmatpush2.bf16.msra.mxu0 0
    %923 = vmatprep.subr.bf16.mxu0 0
    %924 = vmatpush2.bf16.msra.mxu0 0
    %925 = vmatprep.subr.bf16.mxu0 0
    %926 = vmatpush2.bf16.msra.mxu0 0
    %927 = vmatprep.subr.bf16.mxu0 0
    %928 = vmatpush2.bf16.msra.mxu0 0
    %929 = vmatprep.mubr.bf16.mxu0 0
    %930 = vmatmul.mubr.bf16.gmra.mxu0 %v825
    %v931 = vpop.f32.mrf.mxu0
    %v932 = vadd.f32 0.0, %v931
    %v933 = vpop.f32.mrf.mxu0
    %v934 = vpop.f32.mrf.mxu0
    %v935 = vpop.f32.mrf.mxu0
    %936 = vdwg.mxu0
    %v937 = vrot.slane %v696, 3
    %v938 = vrot.slane %v697, 2
    %v939 = vsel %vm170, %v938, %v937
    %v940 = vpack.c.b16 %v939, %v939
    %v942 = vsel %vm117, %v940, 0
    %944 = vmatprep.subr.bf16.mxu0 0
    %945 = vmatpush1.bf16.msra.mxu0 0
    %946 = vmatprep.subr.bf16.mxu0 0
    %947 = vmatpush1.bf16.msra.mxu0 0
    %948 = vmatprep.subr.bf16.mxu0 0
    %949 = vmatpush1.bf16.msra.mxu0 0
    %950 = vmatprep.subr.bf16.mxu0 0
    %951 = vmatpush1.bf16.msra.mxu0 0
    %952 = vmatprep.subr.bf16.mxu0 0
    %953 = vmatpush1.bf16.msra.mxu0 0
    %954 = vmatprep.subr.bf16.mxu0 0
    %955 = vmatpush1.bf16.msra.mxu0 0
    %956 = vmatprep.subr.bf16.mxu0 0
    %957 = vmatpush1.bf16.msra.mxu0 %v182
    %958 = vmatprep.subr.bf16.mxu0 0
    %959 = vmatpush1.bf16.msra.mxu0 %v181
    %960 = vmatprep.subr.bf16.mxu0 0
    %961 = vmatpush2.bf16.msra.mxu0 0
    %962 = vmatprep.subr.bf16.mxu0 0
    %963 = vmatpush2.bf16.msra.mxu0 0
    %964 = vmatprep.subr.bf16.mxu0 0
    %965 = vmatpush2.bf16.msra.mxu0 0
    %966 = vmatprep.subr.bf16.mxu0 0
    %967 = vmatpush2.bf16.msra.mxu0 0
    %968 = vmatprep.subr.bf16.mxu0 0
    %969 = vmatpush2.bf16.msra.mxu0 0
    %970 = vmatprep.subr.bf16.mxu0 0
    %971 = vmatpush2.bf16.msra.mxu0 0
    %972 = vmatprep.subr.bf16.mxu0 0
    %973 = vmatpush2.bf16.msra.mxu0 0
    %974 = vmatprep.subr.bf16.mxu0 0
    %975 = vmatpush2.bf16.msra.mxu0 0
    %976 = vmatprep.mubr.bf16.mxu0 0
    %977 = vmatmul.mubr.bf16.gmra.mxu0 %v942
    %v978 = vpop.f32.mrf.mxu0
    %v979 = vadd.f32 %v932, %v978
    %v980 = vpop.f32.mrf.mxu0
    %v981 = vpop.f32.mrf.mxu0
    %v982 = vpop.f32.mrf.mxu0
    %983 = vdwg.mxu0
    %v984 = vadd.f32 %v979, %v232
    %v985 = vmul.f32 %v984, 2.0
    %v986 = vsel %vm102, %v985, %v984
    %v987 = vxor.u32 %v986, 2147483648
    %v988 = vmul.f32 %v987, 1.442695
    %v989 = vpow.pop %v988
    %v990 = vadd.f32 %v989, 1.0
    %v991 = vrcp.pop %v990
    %v992 = vmul.f32 1.0, %v991
    %v993 = vmul.f32 %v992, 2.0
    %v994 = vsub.f32 %v993, 1.0
    %v995 = vsel %vm102, %v994, %v992
    %v996 = vmul.f32 %v995, %v767
    %998 = vrot.lane.b32.xlu0 %v995, 64
    %v999 = vpop.permute.xlu0 %998
    %v1001 = vmul.f32 %v995, %v999
    %1003 = vrot.lane.b32.xlu0 %v1001, 32
    %v1004 = vpop.permute.xlu0 %1003
    %v1006 = vadd.f32 %v996, %v1004
    %v1007 = vtanh.pop %v1006
    %1009 = vrot.lane.b32.xlu0 %v1007, 64
    %v1010 = vpop.permute.xlu0 %1009
    %v1012 = vmul.f32 %v995, %v1010
    %v1013 = vpack.c.bf16 %v1012, %v1012
    %1015 = vrot.lane.b32.xlu0 %v896, 32
    %v1016 = vpop.permute.xlu0 %1015
    %v1018 = vsel %vm117, %v1016, 0
    %1020 = vmatprep.subr.bf16.mxu0 0
    %1021 = vmatpush1.bf16.msra.mxu0 0
    %1022 = vmatprep.subr.bf16.mxu0 0
    %1023 = vmatpush1.bf16.msra.mxu0 0
    %1024 = vmatprep.subr.bf16.mxu0 0
    %1025 = vmatpush1.bf16.msra.mxu0 0
    %1026 = vmatprep.subr.bf16.mxu0 0
    %1027 = vmatpush1.bf16.msra.mxu0 0
    %1028 = vmatprep.subr.bf16.mxu0 0
    %1029 = vmatpush1.bf16.msra.mxu0 0
    %1030 = vmatprep.subr.bf16.mxu0 0
    %1031 = vmatpush1.bf16.msra.mxu0 0
    %1032 = vmatprep.subr.bf16.mxu0 0
    %1033 = vmatpush1.bf16.msra.mxu0 %v273
    %1034 = vmatprep.subr.bf16.mxu0 0
    %1035 = vmatpush1.bf16.msra.mxu0 %v272
    %1036 = vmatprep.subr.bf16.mxu0 0
    %1037 = vmatpush2.bf16.msra.mxu0 0
    %1038 = vmatprep.subr.bf16.mxu0 0
    %1039 = vmatpush2.bf16.msra.mxu0 0
    %1040 = vmatprep.subr.bf16.mxu0 0
    %1041 = vmatpush2.bf16.msra.mxu0 0
    %1042 = vmatprep.subr.bf16.mxu0 0
    %1043 = vmatpush2.bf16.msra.mxu0 0
    %1044 = vmatprep.subr.bf16.mxu0 0
    %1045 = vmatpush2.bf16.msra.mxu0 0
    %1046 = vmatprep.subr.bf16.mxu0 0
    %1047 = vmatpush2.bf16.msra.mxu0 0
    %1048 = vmatprep.subr.bf16.mxu0 0
    %1049 = vmatpush2.bf16.msra.mxu0 0
    %1050 = vmatprep.subr.bf16.mxu0 0
    %1051 = vmatpush2.bf16.msra.mxu0 0
    %1052 = vmatprep.mubr.bf16.mxu0 0
    %1053 = vmatmul.mubr.bf16.gmra.mxu0 %v1018
    %v1054 = vpop.f32.mrf.mxu0
    %v1055 = vadd.f32 0.0, %v1054
    %v1056 = vpop.f32.mrf.mxu0
    %v1057 = vpop.f32.mrf.mxu0
    %v1058 = vpop.f32.mrf.mxu0
    %1059 = vdwg.mxu0
    %1061 = vrot.lane.b32.xlu0 %v1013, 32
    %v1062 = vpop.permute.xlu0 %1061
    %v1064 = vsel %vm117, %v1062, 0
    %1066 = vmatprep.subr.bf16.mxu0 0
    %1067 = vmatpush1.bf16.msra.mxu0 0
    %1068 = vmatprep.subr.bf16.mxu0 0
    %1069 = vmatpush1.bf16.msra.mxu0 0
    %1070 = vmatprep.subr.bf16.mxu0 0
    %1071 = vmatpush1.bf16.msra.mxu0 0
    %1072 = vmatprep.subr.bf16.mxu0 0
    %1073 = vmatpush1.bf16.msra.mxu0 0
    %1074 = vmatprep.subr.bf16.mxu0 0
    %1075 = vmatpush1.bf16.msra.mxu0 0
    %1076 = vmatprep.subr.bf16.mxu0 0
    %1077 = vmatpush1.bf16.msra.mxu0 0
    %1078 = vmatprep.subr.bf16.mxu0 0
    %1079 = vmatpush1.bf16.msra.mxu0 %v328
    %1080 = vmatprep.subr.bf16.mxu0 0
    %1081 = vmatpush1.bf16.msra.mxu0 %v327
    %1082 = vmatprep.subr.bf16.mxu0 0
    %1083 = vmatpush2.bf16.msra.mxu0 0
    %1084 = vmatprep.subr.bf16.mxu0 0
    %1085 = vmatpush2.bf16.msra.mxu0 0
    %1086 = vmatprep.subr.bf16.mxu0 0
    %1087 = vmatpush2.bf16.msra.mxu0 0
    %1088 = vmatprep.subr.bf16.mxu0 0
    %1089 = vmatpush2.bf16.msra.mxu0 0
    %1090 = vmatprep.subr.bf16.mxu0 0
    %1091 = vmatpush2.bf16.msra.mxu0 0
    %1092 = vmatprep.subr.bf16.mxu0 0
    %1093 = vmatpush2.bf16.msra.mxu0 0
    %1094 = vmatprep.subr.bf16.mxu0 0
    %1095 = vmatpush2.bf16.msra.mxu0 0
    %1096 = vmatprep.subr.bf16.mxu0 0
    %1097 = vmatpush2.bf16.msra.mxu0 0
    %1098 = vmatprep.mubr.bf16.mxu0 0
    %1099 = vmatmul.mubr.bf16.gmra.mxu0 %v1064
    %v1100 = vpop.f32.mrf.mxu0
    %v1101 = vadd.f32 %v1055, %v1100
    %v1102 = vpop.f32.mrf.mxu0
    %v1103 = vpop.f32.mrf.mxu0
    %v1104 = vpop.f32.mrf.mxu0
    %1105 = vdwg.mxu0
    %v1106 = vadd.f32 %v1101, %v378
    %v1107 = vmul.f32 %v1106, 2.0
    %v1108 = vsel %vm102, %v1107, %v1106
    %v1109 = vxor.u32 %v1108, 2147483648
    %v1110 = vmul.f32 %v1109, 1.442695
    %v1111 = vpow.pop %v1110
    %v1112 = vadd.f32 %v1111, 1.0
    %v1113 = vrcp.pop %v1112
    %v1114 = vmul.f32 1.0, %v1113
    %v1115 = vmul.f32 %v1114, 2.0
    %v1116 = vsub.f32 %v1115, 1.0
    %v1117 = vsel %vm102, %v1116, %v1114
    %v1118 = vmul.f32 %v1117, %v889
    %1120 = vrot.lane.b32.xlu0 %v1117, 64
    %v1121 = vpop.permute.xlu0 %1120
    %v1123 = vmul.f32 %v1117, %v1121
    %1125 = vrot.lane.b32.xlu0 %v1123, 32
    %v1126 = vpop.permute.xlu0 %1125
    %v1128 = vadd.f32 %v1118, %v1126
    %v1129 = vtanh.pop %v1128
    %1131 = vrot.lane.b32.xlu0 %v1129, 64
    %v1132 = vpop.permute.xlu0 %1131
    %v1134 = vmul.f32 %v1117, %v1132
    %v1135 = vpack.c.bf16 %v1134, %v1134
    %v1136 = vld [vmem:[#allocation2] sm:$0x4]
    %v1137 = vld [vmem:[#allocation2 + $0x4] sm:$0x4]
    %1138 = vmatprep.subr.bf16.mxu0 0
    %1139 = vmatpush1.bf16.msra.mxu0 0
    %1140 = vmatprep.subr.bf16.mxu0 0
    %1141 = vmatpush1.bf16.msra.mxu0 0
    %1142 = vmatprep.subr.bf16.mxu0 0
    %1143 = vmatpush1.bf16.msra.mxu0 0
    %1144 = vmatprep.subr.bf16.mxu0 0
    %1145 = vmatpush1.bf16.msra.mxu0 0
    %1146 = vmatprep.subr.bf16.mxu0 0
    %1147 = vmatpush1.bf16.msra.mxu0 0
    %1148 = vmatprep.subr.bf16.mxu0 0
    %1149 = vmatpush1.bf16.msra.mxu0 0
    %1150 = vmatprep.subr.bf16.mxu0 0
    %1151 = vmatpush1.bf16.msra.mxu0 %v114
    %1152 = vmatprep.subr.bf16.mxu0 0
    %1153 = vmatpush1.bf16.msra.mxu0 %v113
    %1154 = vmatprep.subr.bf16.mxu0 0
    %1155 = vmatpush2.bf16.msra.mxu0 0
    %1156 = vmatprep.subr.bf16.mxu0 0
    %1157 = vmatpush2.bf16.msra.mxu0 0
    %1158 = vmatprep.subr.bf16.mxu0 0
    %1159 = vmatpush2.bf16.msra.mxu0 0
    %1160 = vmatprep.subr.bf16.mxu0 0
    %1161 = vmatpush2.bf16.msra.mxu0 0
    %1162 = vmatprep.subr.bf16.mxu0 0
    %1163 = vmatpush2.bf16.msra.mxu0 0
    %1164 = vmatprep.subr.bf16.mxu0 0
    %1165 = vmatpush2.bf16.msra.mxu0 0
    %1166 = vmatprep.subr.bf16.mxu0 0
    %1167 = vmatpush2.bf16.msra.mxu0 0
    %1168 = vmatprep.subr.bf16.mxu0 0
    %1169 = vmatpush2.bf16.msra.mxu0 0
    %1170 = vmatprep.mubr.bf16.mxu0 0
    %1171 = vmatmul.mubr.bf16.gmra.mxu0 %v1064
    %v1172 = vpop.f32.mrf.mxu0
    %v1173 = vadd.f32 0.0, %v1172
    %v1174 = vpop.f32.mrf.mxu0
    %v1175 = vpop.f32.mrf.mxu0
    %v1176 = vpop.f32.mrf.mxu0
    %1177 = vdwg.mxu0
    %v1180 = vunpack.c.l.b16 %v1136
    %v1181 = vunpack.c.l.b16 %v1137
    %v1182 = vpack.c.b16 %v1180, %v1180
    %v1183 = vpack.c.b16 %v1181, %v1181
    %v1184 = vunpack.c.l.b16 %v1182
    %v1185 = vunpack.c.l.b16 %v1183
    %v1186 = vrot.slane %v1184, 4
    %v1187 = vrot.slane %v1185, 3
    %v1188 = vsel %vm170, %v1187, %v1186
    %v1189 = vpack.c.b16 %v1188, %v1188
    %v1191 = vsel %vm117, %v1189, 0
    %1193 = vmatprep.subr.bf16.mxu0 0
    %1194 = vmatpush1.bf16.msra.mxu0 0
    %1195 = vmatprep.subr.bf16.mxu0 0
    %1196 = vmatpush1.bf16.msra.mxu0 0
    %1197 = vmatprep.subr.bf16.mxu0 0
    %1198 = vmatpush1.bf16.msra.mxu0 0
    %1199 = vmatprep.subr.bf16.mxu0 0
    %1200 = vmatpush1.bf16.msra.mxu0 0
    %1201 = vmatprep.subr.bf16.mxu0 0
    %1202 = vmatpush1.bf16.msra.mxu0 0
    %1203 = vmatprep.subr.bf16.mxu0 0
    %1204 = vmatpush1.bf16.msra.mxu0 0
    %1205 = vmatprep.subr.bf16.mxu0 0
    %1206 = vmatpush1.bf16.msra.mxu0 %v182
    %1207 = vmatprep.subr.bf16.mxu0 0
    %1208 = vmatpush1.bf16.msra.mxu0 %v181
    %1209 = vmatprep.subr.bf16.mxu0 0
    %1210 = vmatpush2.bf16.msra.mxu0 0
    %1211 = vmatprep.subr.bf16.mxu0 0
    %1212 = vmatpush2.bf16.msra.mxu0 0
    %1213 = vmatprep.subr.bf16.mxu0 0
    %1214 = vmatpush2.bf16.msra.mxu0 0
    %1215 = vmatprep.subr.bf16.mxu0 0
    %1216 = vmatpush2.bf16.msra.mxu0 0
    %1217 = vmatprep.subr.bf16.mxu0 0
    %1218 = vmatpush2.bf16.msra.mxu0 0
    %1219 = vmatprep.subr.bf16.mxu0 0
    %1220 = vmatpush2.bf16.msra.mxu0 0
    %1221 = vmatprep.subr.bf16.mxu0 0
    %1222 = vmatpush2.bf16.msra.mxu0 0
    %1223 = vmatprep.subr.bf16.mxu0 0
    %1224 = vmatpush2.bf16.msra.mxu0 0
    %1225 = vmatprep.mubr.bf16.mxu0 0
    %1226 = vmatmul.mubr.bf16.gmra.mxu0 %v1191
    %v1227 = vpop.f32.mrf.mxu0
    %v1228 = vadd.f32 %v1173, %v1227
    %v1229 = vpop.f32.mrf.mxu0
    %v1230 = vpop.f32.mrf.mxu0
    %v1231 = vpop.f32.mrf.mxu0
    %1232 = vdwg.mxu0
    %v1233 = vadd.f32 %v1228, %v232
    %v1234 = vmul.f32 %v1233, 2.0
    %v1235 = vsel %vm102, %v1234, %v1233
    %v1236 = vxor.u32 %v1235, 2147483648
    %v1237 = vmul.f32 %v1236, 1.442695
    %v1238 = vpow.pop %v1237
    %v1239 = vadd.f32 %v1238, 1.0
    %v1240 = vrcp.pop %v1239
    %v1241 = vmul.f32 1.0, %v1240
    %v1242 = vmul.f32 %v1241, 2.0
    %v1243 = vsub.f32 %v1242, 1.0
    %v1244 = vsel %vm102, %v1243, %v1241
    %v1245 = vmul.f32 %v1244, %v1006
    %1247 = vrot.lane.b32.xlu0 %v1244, 64
    %v1248 = vpop.permute.xlu0 %1247
    %v1250 = vmul.f32 %v1244, %v1248
    %1252 = vrot.lane.b32.xlu0 %v1250, 32
    %v1253 = vpop.permute.xlu0 %1252
    %v1255 = vadd.f32 %v1245, %v1253
    %v1256 = vtanh.pop %v1255
    %1258 = vrot.lane.b32.xlu0 %v1256, 64
    %v1259 = vpop.permute.xlu0 %1258
    %v1261 = vmul.f32 %v1244, %v1259
    %v1262 = vpack.c.bf16 %v1261, %v1261
    %1264 = vrot.lane.b32.xlu0 %v1135, 32
    %v1265 = vpop.permute.xlu0 %1264
    %v1267 = vsel %vm117, %v1265, 0
    %1269 = vmatprep.subr.bf16.mxu0 0
    %1270 = vmatpush1.bf16.msra.mxu0 0
    %1271 = vmatprep.subr.bf16.mxu0 0
    %1272 = vmatpush1.bf16.msra.mxu0 0
    %1273 = vmatprep.subr.bf16.mxu0 0
    %1274 = vmatpush1.bf16.msra.mxu0 0
    %1275 = vmatprep.subr.bf16.mxu0 0
    %1276 = vmatpush1.bf16.msra.mxu0 0
    %1277 = vmatprep.subr.bf16.mxu0 0
    %1278 = vmatpush1.bf16.msra.mxu0 0
    %1279 = vmatprep.subr.bf16.mxu0 0
    %1280 = vmatpush1.bf16.msra.mxu0 0
    %1281 = vmatprep.subr.bf16.mxu0 0
    %1282 = vmatpush1.bf16.msra.mxu0 %v273
    %1283 = vmatprep.subr.bf16.mxu0 0
    %1284 = vmatpush1.bf16.msra.mxu0 %v272
    %1285 = vmatprep.subr.bf16.mxu0 0
    %1286 = vmatpush2.bf16.msra.mxu0 0
    %1287 = vmatprep.subr.bf16.mxu0 0
    %1288 = vmatpush2.bf16.msra.mxu0 0
    %1289 = vmatprep.subr.bf16.mxu0 0
    %1290 = vmatpush2.bf16.msra.mxu0 0
    %1291 = vmatprep.subr.bf16.mxu0 0
    %1292 = vmatpush2.bf16.msra.mxu0 0
    %1293 = vmatprep.subr.bf16.mxu0 0
    %1294 = vmatpush2.bf16.msra.mxu0 0
    %1295 = vmatprep.subr.bf16.mxu0 0
    %1296 = vmatpush2.bf16.msra.mxu0 0
    %1297 = vmatprep.subr.bf16.mxu0 0
    %1298 = vmatpush2.bf16.msra.mxu0 0
    %1299 = vmatprep.subr.bf16.mxu0 0
    %1300 = vmatpush2.bf16.msra.mxu0 0
    %1301 = vmatprep.mubr.bf16.mxu0 0
    %1302 = vmatmul.mubr.bf16.gmra.mxu0 %v1267
    %v1303 = vpop.f32.mrf.mxu0
    %v1304 = vadd.f32 0.0, %v1303
    %v1305 = vpop.f32.mrf.mxu0
    %v1306 = vpop.f32.mrf.mxu0
    %v1307 = vpop.f32.mrf.mxu0
    %1308 = vdwg.mxu0
    %1310 = vrot.lane.b32.xlu0 %v1262, 32
    %v1311 = vpop.permute.xlu0 %1310
    %v1313 = vsel %vm117, %v1311, 0
    %1315 = vmatprep.subr.bf16.mxu0 0
    %1316 = vmatpush1.bf16.msra.mxu0 0
    %1317 = vmatprep.subr.bf16.mxu0 0
    %1318 = vmatpush1.bf16.msra.mxu0 0
    %1319 = vmatprep.subr.bf16.mxu0 0
    %1320 = vmatpush1.bf16.msra.mxu0 0
    %1321 = vmatprep.subr.bf16.mxu0 0
    %1322 = vmatpush1.bf16.msra.mxu0 0
    %1323 = vmatprep.subr.bf16.mxu0 0
    %1324 = vmatpush1.bf16.msra.mxu0 0
    %1325 = vmatprep.subr.bf16.mxu0 0
    %1326 = vmatpush1.bf16.msra.mxu0 0
    %1327 = vmatprep.subr.bf16.mxu0 0
    %1328 = vmatpush1.bf16.msra.mxu0 %v328
    %1329 = vmatprep.subr.bf16.mxu0 0
    %1330 = vmatpush1.bf16.msra.mxu0 %v327
    %1331 = vmatprep.subr.bf16.mxu0 0
    %1332 = vmatpush2.bf16.msra.mxu0 0
    %1333 = vmatprep.subr.bf16.mxu0 0
    %1334 = vmatpush2.bf16.msra.mxu0 0
    %1335 = vmatprep.subr.bf16.mxu0 0
    %1336 = vmatpush2.bf16.msra.mxu0 0
    %1337 = vmatprep.subr.bf16.mxu0 0
    %1338 = vmatpush2.bf16.msra.mxu0 0
    %1339 = vmatprep.subr.bf16.mxu0 0
    %1340 = vmatpush2.bf16.msra.mxu0 0
    %1341 = vmatprep.subr.bf16.mxu0 0
    %1342 = vmatpush2.bf16.msra.mxu0 0
    %1343 = vmatprep.subr.bf16.mxu0 0
    %1344 = vmatpush2.bf16.msra.mxu0 0
    %1345 = vmatprep.subr.bf16.mxu0 0
    %1346 = vmatpush2.bf16.msra.mxu0 0
    %1347 = vmatprep.mubr.bf16.mxu0 0
    %1348 = vmatmul.mubr.bf16.gmra.mxu0 %v1313
    %v1349 = vpop.f32.mrf.mxu0
    %v1350 = vadd.f32 %v1304, %v1349
    %v1351 = vpop.f32.mrf.mxu0
    %v1352 = vpop.f32.mrf.mxu0
    %v1353 = vpop.f32.mrf.mxu0
    %1354 = vdwg.mxu0
    %v1355 = vadd.f32 %v1350, %v378
    %v1356 = vmul.f32 %v1355, 2.0
    %v1357 = vsel %vm102, %v1356, %v1355
    %v1358 = vxor.u32 %v1357, 2147483648
    %v1359 = vmul.f32 %v1358, 1.442695
    %v1360 = vpow.pop %v1359
    %v1361 = vadd.f32 %v1360, 1.0
    %v1362 = vrcp.pop %v1361
    %v1363 = vmul.f32 1.0, %v1362
    %v1364 = vmul.f32 %v1363, 2.0
    %v1365 = vsub.f32 %v1364, 1.0
    %v1366 = vsel %vm102, %v1365, %v1363
    %v1367 = vmul.f32 %v1366, %v1128
    %1369 = vrot.lane.b32.xlu0 %v1366, 64
    %v1370 = vpop.permute.xlu0 %1369
    %v1372 = vmul.f32 %v1366, %v1370
    %1374 = vrot.lane.b32.xlu0 %v1372, 32
    %v1375 = vpop.permute.xlu0 %1374
    %v1377 = vadd.f32 %v1367, %v1375
    %v1378 = vtanh.pop %v1377
    %1380 = vrot.lane.b32.xlu0 %v1378, 64
    %v1381 = vpop.permute.xlu0 %1380
    %v1383 = vmul.f32 %v1366, %v1381
    %v1384 = vpack.c.bf16 %v1383, %v1383
    %1385 = vmatprep.subr.bf16.mxu0 0
    %1386 = vmatpush1.bf16.msra.mxu0 0
    %1387 = vmatprep.subr.bf16.mxu0 0
    %1388 = vmatpush1.bf16.msra.mxu0 0
    %1389 = vmatprep.subr.bf16.mxu0 0
    %1390 = vmatpush1.bf16.msra.mxu0 0
    %1391 = vmatprep.subr.bf16.mxu0 0
    %1392 = vmatpush1.bf16.msra.mxu0 0
    %1393 = vmatprep.subr.bf16.mxu0 0
    %1394 = vmatpush1.bf16.msra.mxu0 0
    %1395 = vmatprep.subr.bf16.mxu0 0
    %1396 = vmatpush1.bf16.msra.mxu0 0
    %1397 = vmatprep.subr.bf16.mxu0 0
    %1398 = vmatpush1.bf16.msra.mxu0 %v114
    %1399 = vmatprep.subr.bf16.mxu0 0
    %1400 = vmatpush1.bf16.msra.mxu0 %v113
    %1401 = vmatprep.subr.bf16.mxu0 0
    %1402 = vmatpush2.bf16.msra.mxu0 0
    %1403 = vmatprep.subr.bf16.mxu0 0
    %1404 = vmatpush2.bf16.msra.mxu0 0
    %1405 = vmatprep.subr.bf16.mxu0 0
    %1406 = vmatpush2.bf16.msra.mxu0 0
    %1407 = vmatprep.subr.bf16.mxu0 0
    %1408 = vmatpush2.bf16.msra.mxu0 0
    %1409 = vmatprep.subr.bf16.mxu0 0
    %1410 = vmatpush2.bf16.msra.mxu0 0
    %1411 = vmatprep.subr.bf16.mxu0 0
    %1412 = vmatpush2.bf16.msra.mxu0 0
    %1413 = vmatprep.subr.bf16.mxu0 0
    %1414 = vmatpush2.bf16.msra.mxu0 0
    %1415 = vmatprep.subr.bf16.mxu0 0
    %1416 = vmatpush2.bf16.msra.mxu0 0
    %1417 = vmatprep.mubr.bf16.mxu0 0
    %1418 = vmatmul.mubr.bf16.gmra.mxu0 %v1313
    %v1419 = vpop.f32.mrf.mxu0
    %v1420 = vadd.f32 0.0, %v1419
    %v1421 = vpop.f32.mrf.mxu0
    %v1422 = vpop.f32.mrf.mxu0
    %v1423 = vpop.f32.mrf.mxu0
    %1424 = vdwg.mxu0
    %v1425 = vrot.slane %v1184, 5
    %v1426 = vrot.slane %v1185, 4
    %v1427 = vsel %vm170, %v1426, %v1425
    %v1428 = vpack.c.b16 %v1427, %v1427
    %v1430 = vsel %vm117, %v1428, 0
    %1432 = vmatprep.subr.bf16.mxu0 0
    %1433 = vmatpush1.bf16.msra.mxu0 0
    %1434 = vmatprep.subr.bf16.mxu0 0
    %1435 = vmatpush1.bf16.msra.mxu0 0
    %1436 = vmatprep.subr.bf16.mxu0 0
    %1437 = vmatpush1.bf16.msra.mxu0 0
    %1438 = vmatprep.subr.bf16.mxu0 0
    %1439 = vmatpush1.bf16.msra.mxu0 0
    %1440 = vmatprep.subr.bf16.mxu0 0
    %1441 = vmatpush1.bf16.msra.mxu0 0
    %1442 = vmatprep.subr.bf16.mxu0 0
    %1443 = vmatpush1.bf16.msra.mxu0 0
    %1444 = vmatprep.subr.bf16.mxu0 0
    %1445 = vmatpush1.bf16.msra.mxu0 %v182
    %1446 = vmatprep.subr.bf16.mxu0 0
    %1447 = vmatpush1.bf16.msra.mxu0 %v181
    %1448 = vmatprep.subr.bf16.mxu0 0
    %1449 = vmatpush2.bf16.msra.mxu0 0
    %1450 = vmatprep.subr.bf16.mxu0 0
    %1451 = vmatpush2.bf16.msra.mxu0 0
    %1452 = vmatprep.subr.bf16.mxu0 0
    %1453 = vmatpush2.bf16.msra.mxu0 0
    %1454 = vmatprep.subr.bf16.mxu0 0
    %1455 = vmatpush2.bf16.msra.mxu0 0
    %1456 = vmatprep.subr.bf16.mxu0 0
    %1457 = vmatpush2.bf16.msra.mxu0 0
    %1458 = vmatprep.subr.bf16.mxu0 0
    %1459 = vmatpush2.bf16.msra.mxu0 0
    %1460 = vmatprep.subr.bf16.mxu0 0
    %1461 = vmatpush2.bf16.msra.mxu0 0
    %1462 = vmatprep.subr.bf16.mxu0 0
    %1463 = vmatpush2.bf16.msra.mxu0 0
    %1464 = vmatprep.mubr.bf16.mxu0 0
    %1465 = vmatmul.mubr.bf16.gmra.mxu0 %v1430
    %v1466 = vpop.f32.mrf.mxu0
    %v1467 = vadd.f32 %v1420, %v1466
    %v1468 = vpop.f32.mrf.mxu0
    %v1469 = vpop.f32.mrf.mxu0
    %v1470 = vpop.f32.mrf.mxu0
    %1471 = vdwg.mxu0
    %v1472 = vadd.f32 %v1467, %v232
    %v1473 = vmul.f32 %v1472, 2.0
    %v1474 = vsel %vm102, %v1473, %v1472
    %v1475 = vxor.u32 %v1474, 2147483648
    %v1476 = vmul.f32 %v1475, 1.442695
    %v1477 = vpow.pop %v1476
    %v1478 = vadd.f32 %v1477, 1.0
    %v1479 = vrcp.pop %v1478
    %v1480 = vmul.f32 1.0, %v1479
    %v1481 = vmul.f32 %v1480, 2.0
    %v1482 = vsub.f32 %v1481, 1.0
    %v1483 = vsel %vm102, %v1482, %v1480
    %v1484 = vmul.f32 %v1483, %v1255
    %1486 = vrot.lane.b32.xlu0 %v1483, 64
    %v1487 = vpop.permute.xlu0 %1486
    %v1489 = vmul.f32 %v1483, %v1487
    %1491 = vrot.lane.b32.xlu0 %v1489, 32
    %v1492 = vpop.permute.xlu0 %1491
    %v1494 = vadd.f32 %v1484, %v1492
    %v1495 = vtanh.pop %v1494
    %1497 = vrot.lane.b32.xlu0 %v1495, 64
    %v1498 = vpop.permute.xlu0 %1497
    %v1500 = vmul.f32 %v1483, %v1498
    %v1501 = vpack.c.bf16 %v1500, %v1500
    %1503 = vrot.lane.b32.xlu0 %v1384, 32
    %v1504 = vpop.permute.xlu0 %1503
    %v1506 = vsel %vm117, %v1504, 0
    %1508 = vmatprep.subr.bf16.mxu0 0
    %1509 = vmatpush1.bf16.msra.mxu0 0
    %1510 = vmatprep.subr.bf16.mxu0 0
    %1511 = vmatpush1.bf16.msra.mxu0 0
    %1512 = vmatprep.subr.bf16.mxu0 0
    %1513 = vmatpush1.bf16.msra.mxu0 0
    %1514 = vmatprep.subr.bf16.mxu0 0
    %1515 = vmatpush1.bf16.msra.mxu0 0
    %1516 = vmatprep.subr.bf16.mxu0 0
    %1517 = vmatpush1.bf16.msra.mxu0 0
    %1518 = vmatprep.subr.bf16.mxu0 0
    %1519 = vmatpush1.bf16.msra.mxu0 0
    %1520 = vmatprep.subr.bf16.mxu0 0
    %1521 = vmatpush1.bf16.msra.mxu0 %v273
    %1522 = vmatprep.subr.bf16.mxu0 0
    %1523 = vmatpush1.bf16.msra.mxu0 %v272
    %1524 = vmatprep.subr.bf16.mxu0 0
    %1525 = vmatpush2.bf16.msra.mxu0 0
    %1526 = vmatprep.subr.bf16.mxu0 0
    %1527 = vmatpush2.bf16.msra.mxu0 0
    %1528 = vmatprep.subr.bf16.mxu0 0
    %1529 = vmatpush2.bf16.msra.mxu0 0
    %1530 = vmatprep.subr.bf16.mxu0 0
    %1531 = vmatpush2.bf16.msra.mxu0 0
    %1532 = vmatprep.subr.bf16.mxu0 0
    %1533 = vmatpush2.bf16.msra.mxu0 0
    %1534 = vmatprep.subr.bf16.mxu0 0
    %1535 = vmatpush2.bf16.msra.mxu0 0
    %1536 = vmatprep.subr.bf16.mxu0 0
    %1537 = vmatpush2.bf16.msra.mxu0 0
    %1538 = vmatprep.subr.bf16.mxu0 0
    %1539 = vmatpush2.bf16.msra.mxu0 0
    %1540 = vmatprep.mubr.bf16.mxu0 0
    %1541 = vmatmul.mubr.bf16.gmra.mxu0 %v1506
    %v1542 = vpop.f32.mrf.mxu0
    %v1543 = vadd.f32 0.0, %v1542
    %v1544 = vpop.f32.mrf.mxu0
    %v1545 = vpop.f32.mrf.mxu0
    %v1546 = vpop.f32.mrf.mxu0
    %1547 = vdwg.mxu0
    %1549 = vrot.lane.b32.xlu0 %v1501, 32
    %v1550 = vpop.permute.xlu0 %1549
    %v1552 = vsel %vm117, %v1550, 0
    %1554 = vmatprep.subr.bf16.mxu0 0
    %1555 = vmatpush1.bf16.msra.mxu0 0
    %1556 = vmatprep.subr.bf16.mxu0 0
    %1557 = vmatpush1.bf16.msra.mxu0 0
    %1558 = vmatprep.subr.bf16.mxu0 0
    %1559 = vmatpush1.bf16.msra.mxu0 0
    %1560 = vmatprep.subr.bf16.mxu0 0
    %1561 = vmatpush1.bf16.msra.mxu0 0
    %1562 = vmatprep.subr.bf16.mxu0 0
    %1563 = vmatpush1.bf16.msra.mxu0 0
    %1564 = vmatprep.subr.bf16.mxu0 0
    %1565 = vmatpush1.bf16.msra.mxu0 0
    %1566 = vmatprep.subr.bf16.mxu0 0
    %1567 = vmatpush1.bf16.msra.mxu0 %v328
    %1568 = vmatprep.subr.bf16.mxu0 0
    %1569 = vmatpush1.bf16.msra.mxu0 %v327
    %1570 = vmatprep.subr.bf16.mxu0 0
    %1571 = vmatpush2.bf16.msra.mxu0 0
    %1572 = vmatprep.subr.bf16.mxu0 0
    %1573 = vmatpush2.bf16.msra.mxu0 0
    %1574 = vmatprep.subr.bf16.mxu0 0
    %1575 = vmatpush2.bf16.msra.mxu0 0
    %1576 = vmatprep.subr.bf16.mxu0 0
    %1577 = vmatpush2.bf16.msra.mxu0 0
    %1578 = vmatprep.subr.bf16.mxu0 0
    %1579 = vmatpush2.bf16.msra.mxu0 0
    %1580 = vmatprep.subr.bf16.mxu0 0
    %1581 = vmatpush2.bf16.msra.mxu0 0
    %1582 = vmatprep.subr.bf16.mxu0 0
    %1583 = vmatpush2.bf16.msra.mxu0 0
    %1584 = vmatprep.subr.bf16.mxu0 0
    %1585 = vmatpush2.bf16.msra.mxu0 0
    %1586 = vmatprep.mubr.bf16.mxu0 0
    %1587 = vmatmul.mubr.bf16.gmra.mxu0 %v1552
    %v1588 = vpop.f32.mrf.mxu0
    %v1589 = vadd.f32 %v1543, %v1588
    %v1590 = vpop.f32.mrf.mxu0
    %v1591 = vpop.f32.mrf.mxu0
    %v1592 = vpop.f32.mrf.mxu0
    %1593 = vdwg.mxu0
    %v1594 = vadd.f32 %v1589, %v378
    %v1595 = vmul.f32 %v1594, 2.0
    %v1596 = vsel %vm102, %v1595, %v1594
    %v1597 = vxor.u32 %v1596, 2147483648
    %v1598 = vmul.f32 %v1597, 1.442695
    %v1599 = vpow.pop %v1598
    %v1600 = vadd.f32 %v1599, 1.0
    %v1601 = vrcp.pop %v1600
    %v1602 = vmul.f32 1.0, %v1601
    %v1603 = vmul.f32 %v1602, 2.0
    %v1604 = vsub.f32 %v1603, 1.0
    %v1605 = vsel %vm102, %v1604, %v1602
    %v1606 = vmul.f32 %v1605, %v1377
    %1608 = vrot.lane.b32.xlu0 %v1605, 64
    %v1609 = vpop.permute.xlu0 %1608
    %v1611 = vmul.f32 %v1605, %v1609
    %1613 = vrot.lane.b32.xlu0 %v1611, 32
    %v1614 = vpop.permute.xlu0 %1613
    %v1616 = vadd.f32 %v1606, %v1614
    %v1617 = vtanh.pop %v1616
    %1619 = vrot.lane.b32.xlu0 %v1617, 64
    %v1620 = vpop.permute.xlu0 %1619
    %v1622 = vmul.f32 %v1605, %v1620
    %v1623 = vpack.c.bf16 %v1622, %v1622
    %v1624 = vld [vmem:[#allocation2] sm:$0x8]
    %v1625 = vld [vmem:[#allocation2 + $0x4] sm:$0x8]
    %1626 = vmatprep.subr.bf16.mxu0 0
    %1627 = vmatpush1.bf16.msra.mxu0 0
    %1628 = vmatprep.subr.bf16.mxu0 0
    %1629 = vmatpush1.bf16.msra.mxu0 0
    %1630 = vmatprep.subr.bf16.mxu0 0
    %1631 = vmatpush1.bf16.msra.mxu0 0
    %1632 = vmatprep.subr.bf16.mxu0 0
    %1633 = vmatpush1.bf16.msra.mxu0 0
    %1634 = vmatprep.subr.bf16.mxu0 0
    %1635 = vmatpush1.bf16.msra.mxu0 0
    %1636 = vmatprep.subr.bf16.mxu0 0
    %1637 = vmatpush1.bf16.msra.mxu0 0
    %1638 = vmatprep.subr.bf16.mxu0 0
    %1639 = vmatpush1.bf16.msra.mxu0 %v114
    %1640 = vmatprep.subr.bf16.mxu0 0
    %1641 = vmatpush1.bf16.msra.mxu0 %v113
    %1642 = vmatprep.subr.bf16.mxu0 0
    %1643 = vmatpush2.bf16.msra.mxu0 0
    %1644 = vmatprep.subr.bf16.mxu0 0
    %1645 = vmatpush2.bf16.msra.mxu0 0
    %1646 = vmatprep.subr.bf16.mxu0 0
    %1647 = vmatpush2.bf16.msra.mxu0 0
    %1648 = vmatprep.subr.bf16.mxu0 0
    %1649 = vmatpush2.bf16.msra.mxu0 0
    %1650 = vmatprep.subr.bf16.mxu0 0
    %1651 = vmatpush2.bf16.msra.mxu0 0
    %1652 = vmatprep.subr.bf16.mxu0 0
    %1653 = vmatpush2.bf16.msra.mxu0 0
    %1654 = vmatprep.subr.bf16.mxu0 0
    %1655 = vmatpush2.bf16.msra.mxu0 0
    %1656 = vmatprep.subr.bf16.mxu0 0
    %1657 = vmatpush2.bf16.msra.mxu0 0
    %1658 = vmatprep.mubr.bf16.mxu0 0
    %1659 = vmatmul.mubr.bf16.gmra.mxu0 %v1552
    %v1660 = vpop.f32.mrf.mxu0
    %v1661 = vadd.f32 0.0, %v1660
    %v1662 = vpop.f32.mrf.mxu0
    %v1663 = vpop.f32.mrf.mxu0
    %v1664 = vpop.f32.mrf.mxu0
    %1665 = vdwg.mxu0
    %v1668 = vunpack.c.l.b16 %v1624
    %v1669 = vunpack.c.l.b16 %v1625
    %v1670 = vpack.c.b16 %v1668, %v1668
    %v1671 = vpack.c.b16 %v1669, %v1669
    %v1672 = vunpack.c.l.b16 %v1670
    %v1673 = vunpack.c.l.b16 %v1671
    %v1674 = vrot.slane %v1672, 6
    %v1675 = vrot.slane %v1673, 5
    %v1676 = vsel %vm170, %v1675, %v1674
    %v1677 = vpack.c.b16 %v1676, %v1676
    %v1679 = vsel %vm117, %v1677, 0
    %1681 = vmatprep.subr.bf16.mxu0 0
    %1682 = vmatpush1.bf16.msra.mxu0 0
    %1683 = vmatprep.subr.bf16.mxu0 0
    %1684 = vmatpush1.bf16.msra.mxu0 0
    %1685 = vmatprep.subr.bf16.mxu0 0
    %1686 = vmatpush1.bf16.msra.mxu0 0
    %1687 = vmatprep.subr.bf16.mxu0 0
    %1688 = vmatpush1.bf16.msra.mxu0 0
    %1689 = vmatprep.subr.bf16.mxu0 0
    %1690 = vmatpush1.bf16.msra.mxu0 0
    %1691 = vmatprep.subr.bf16.mxu0 0
    %1692 = vmatpush1.bf16.msra.mxu0 0
    %1693 = vmatprep.subr.bf16.mxu0 0
    %1694 = vmatpush1.bf16.msra.mxu0 %v182
    %1695 = vmatprep.subr.bf16.mxu0 0
    %1696 = vmatpush1.bf16.msra.mxu0 %v181
    %1697 = vmatprep.subr.bf16.mxu0 0
    %1698 = vmatpush2.bf16.msra.mxu0 0
    %1699 = vmatprep.subr.bf16.mxu0 0
    %1700 = vmatpush2.bf16.msra.mxu0 0
    %1701 = vmatprep.subr.bf16.mxu0 0
    %1702 = vmatpush2.bf16.msra.mxu0 0
    %1703 = vmatprep.subr.bf16.mxu0 0
    %1704 = vmatpush2.bf16.msra.mxu0 0
    %1705 = vmatprep.subr.bf16.mxu0 0
    %1706 = vmatpush2.bf16.msra.mxu0 0
    %1707 = vmatprep.subr.bf16.mxu0 0
    %1708 = vmatpush2.bf16.msra.mxu0 0
    %1709 = vmatprep.subr.bf16.mxu0 0
    %1710 = vmatpush2.bf16.msra.mxu0 0
    %1711 = vmatprep.subr.bf16.mxu0 0
    %1712 = vmatpush2.bf16.msra.mxu0 0
    %1713 = vmatprep.mubr.bf16.mxu0 0
    %1714 = vmatmul.mubr.bf16.gmra.mxu0 %v1679
    %v1715 = vpop.f32.mrf.mxu0
    %v1716 = vadd.f32 %v1661, %v1715
    %v1717 = vpop.f32.mrf.mxu0
    %v1718 = vpop.f32.mrf.mxu0
    %v1719 = vpop.f32.mrf.mxu0
    %1720 = vdwg.mxu0
    %v1721 = vadd.f32 %v1716, %v232
    %v1722 = vmul.f32 %v1721, 2.0
    %v1723 = vsel %vm102, %v1722, %v1721
    %v1724 = vxor.u32 %v1723, 2147483648
    %v1725 = vmul.f32 %v1724, 1.442695
    %v1726 = vpow.pop %v1725
    %v1727 = vadd.f32 %v1726, 1.0
    %v1728 = vrcp.pop %v1727
    %v1729 = vmul.f32 1.0, %v1728
    %v1730 = vmul.f32 %v1729, 2.0
    %v1731 = vsub.f32 %v1730, 1.0
    %v1732 = vsel %vm102, %v1731, %v1729
    %v1733 = vmul.f32 %v1732, %v1494
    %1735 = vrot.lane.b32.xlu0 %v1732, 64
    %v1736 = vpop.permute.xlu0 %1735
    %v1738 = vmul.f32 %v1732, %v1736
    %1740 = vrot.lane.b32.xlu0 %v1738, 32
    %v1741 = vpop.permute.xlu0 %1740
    %v1743 = vadd.f32 %v1733, %v1741
    %v1744 = vtanh.pop %v1743
    %1746 = vrot.lane.b32.xlu0 %v1744, 64
    %v1747 = vpop.permute.xlu0 %1746
    %v1749 = vmul.f32 %v1732, %v1747
    %v1750 = vpack.c.bf16 %v1749, %v1749
    %1752 = vrot.lane.b32.xlu0 %v1623, 32
    %v1753 = vpop.permute.xlu0 %1752
    %v1755 = vsel %vm117, %v1753, 0
    %1757 = vmatprep.subr.bf16.mxu0 0
    %1758 = vmatpush1.bf16.msra.mxu0 0
    %1759 = vmatprep.subr.bf16.mxu0 0
    %1760 = vmatpush1.bf16.msra.mxu0 0
    %1761 = vmatprep.subr.bf16.mxu0 0
    %1762 = vmatpush1.bf16.msra.mxu0 0
    %1763 = vmatprep.subr.bf16.mxu0 0
    %1764 = vmatpush1.bf16.msra.mxu0 0
    %1765 = vmatprep.subr.bf16.mxu0 0
    %1766 = vmatpush1.bf16.msra.mxu0 0
    %1767 = vmatprep.subr.bf16.mxu0 0
    %1768 = vmatpush1.bf16.msra.mxu0 0
    %1769 = vmatprep.subr.bf16.mxu0 0
    %1770 = vmatpush1.bf16.msra.mxu0 %v273
    %1771 = vmatprep.subr.bf16.mxu0 0
    %1772 = vmatpush1.bf16.msra.mxu0 %v272
    %1773 = vmatprep.subr.bf16.mxu0 0
    %1774 = vmatpush2.bf16.msra.mxu0 0
    %1775 = vmatprep.subr.bf16.mxu0 0
    %1776 = vmatpush2.bf16.msra.mxu0 0
    %1777 = vmatprep.subr.bf16.mxu0 0
    %1778 = vmatpush2.bf16.msra.mxu0 0
    %1779 = vmatprep.subr.bf16.mxu0 0
    %1780 = vmatpush2.bf16.msra.mxu0 0
    %1781 = vmatprep.subr.bf16.mxu0 0
    %1782 = vmatpush2.bf16.msra.mxu0 0
    %1783 = vmatprep.subr.bf16.mxu0 0
    %1784 = vmatpush2.bf16.msra.mxu0 0
    %1785 = vmatprep.subr.bf16.mxu0 0
    %1786 = vmatpush2.bf16.msra.mxu0 0
    %1787 = vmatprep.subr.bf16.mxu0 0
    %1788 = vmatpush2.bf16.msra.mxu0 0
    %1789 = vmatprep.mubr.bf16.mxu0 0
    %1790 = vmatmul.mubr.bf16.gmra.mxu0 %v1755
    %v1791 = vpop.f32.mrf.mxu0
    %v1792 = vadd.f32 0.0, %v1791
    %v1793 = vpop.f32.mrf.mxu0
    %v1794 = vpop.f32.mrf.mxu0
    %v1795 = vpop.f32.mrf.mxu0
    %1796 = vdwg.mxu0
    %1798 = vrot.lane.b32.xlu0 %v1750, 32
    %v1799 = vpop.permute.xlu0 %1798
    %v1801 = vsel %vm117, %v1799, 0
    %1803 = vmatprep.subr.bf16.mxu0 0
    %1804 = vmatpush1.bf16.msra.mxu0 0
    %1805 = vmatprep.subr.bf16.mxu0 0
    %1806 = vmatpush1.bf16.msra.mxu0 0
    %1807 = vmatprep.subr.bf16.mxu0 0
    %1808 = vmatpush1.bf16.msra.mxu0 0
    %1809 = vmatprep.subr.bf16.mxu0 0
    %1810 = vmatpush1.bf16.msra.mxu0 0
    %1811 = vmatprep.subr.bf16.mxu0 0
    %1812 = vmatpush1.bf16.msra.mxu0 0
    %1813 = vmatprep.subr.bf16.mxu0 0
    %1814 = vmatpush1.bf16.msra.mxu0 0
    %1815 = vmatprep.subr.bf16.mxu0 0
    %1816 = vmatpush1.bf16.msra.mxu0 %v328
    %1817 = vmatprep.subr.bf16.mxu0 0
    %1818 = vmatpush1.bf16.msra.mxu0 %v327
    %1819 = vmatprep.subr.bf16.mxu0 0
    %1820 = vmatpush2.bf16.msra.mxu0 0
    %1821 = vmatprep.subr.bf16.mxu0 0
    %1822 = vmatpush2.bf16.msra.mxu0 0
    %1823 = vmatprep.subr.bf16.mxu0 0
    %1824 = vmatpush2.bf16.msra.mxu0 0
    %1825 = vmatprep.subr.bf16.mxu0 0
    %1826 = vmatpush2.bf16.msra.mxu0 0
    %1827 = vmatprep.subr.bf16.mxu0 0
    %1828 = vmatpush2.bf16.msra.mxu0 0
    %1829 = vmatprep.subr.bf16.mxu0 0
    %1830 = vmatpush2.bf16.msra.mxu0 0
    %1831 = vmatprep.subr.bf16.mxu0 0
    %1832 = vmatpush2.bf16.msra.mxu0 0
    %1833 = vmatprep.subr.bf16.mxu0 0
    %1834 = vmatpush2.bf16.msra.mxu0 0
    %1835 = vmatprep.mubr.bf16.mxu0 0
    %1836 = vmatmul.mubr.bf16.gmra.mxu0 %v1801
    %v1837 = vpop.f32.mrf.mxu0
    %v1838 = vadd.f32 %v1792, %v1837
    %v1839 = vpop.f32.mrf.mxu0
    %v1840 = vpop.f32.mrf.mxu0
    %v1841 = vpop.f32.mrf.mxu0
    %1842 = vdwg.mxu0
    %v1843 = vadd.f32 %v1838, %v378
    %v1844 = vmul.f32 %v1843, 2.0
    %v1845 = vsel %vm102, %v1844, %v1843
    %v1846 = vxor.u32 %v1845, 2147483648
    %v1847 = vmul.f32 %v1846, 1.442695
    %v1848 = vpow.pop %v1847
    %v1849 = vadd.f32 %v1848, 1.0
    %v1850 = vrcp.pop %v1849
    %v1851 = vmul.f32 1.0, %v1850
    %v1852 = vmul.f32 %v1851, 2.0
    %v1853 = vsub.f32 %v1852, 1.0
    %v1854 = vsel %vm102, %v1853, %v1851
    %v1855 = vmul.f32 %v1854, %v1616
    %1857 = vrot.lane.b32.xlu0 %v1854, 64
    %v1858 = vpop.permute.xlu0 %1857
    %v1860 = vmul.f32 %v1854, %v1858
    %1862 = vrot.lane.b32.xlu0 %v1860, 32
    %v1863 = vpop.permute.xlu0 %1862
    %v1865 = vadd.f32 %v1855, %v1863
    %v1866 = vtanh.pop %v1865
    %1868 = vrot.lane.b32.xlu0 %v1866, 64
    %v1869 = vpop.permute.xlu0 %1868
    %v1871 = vmul.f32 %v1854, %v1869
    %v1872 = vpack.c.bf16 %v1871, %v1871
    %1873 = vmatprep.subr.bf16.mxu0 0
    %1874 = vmatpush1.bf16.msra.mxu0 0
    %1875 = vmatprep.subr.bf16.mxu0 0
    %1876 = vmatpush1.bf16.msra.mxu0 0
    %1877 = vmatprep.subr.bf16.mxu0 0
    %1878 = vmatpush1.bf16.msra.mxu0 0
    %1879 = vmatprep.subr.bf16.mxu0 0
    %1880 = vmatpush1.bf16.msra.mxu0 0
    %1881 = vmatprep.subr.bf16.mxu0 0
    %1882 = vmatpush1.bf16.msra.mxu0 0
    %1883 = vmatprep.subr.bf16.mxu0 0
    %1884 = vmatpush1.bf16.msra.mxu0 0
    %1885 = vmatprep.subr.bf16.mxu0 0
    %1886 = vmatpush1.bf16.msra.mxu0 %v114
    %1887 = vmatprep.subr.bf16.mxu0 0
    %1888 = vmatpush1.bf16.msra.mxu0 %v113
    %1889 = vmatprep.subr.bf16.mxu0 0
    %1890 = vmatpush2.bf16.msra.mxu0 0
    %1891 = vmatprep.subr.bf16.mxu0 0
    %1892 = vmatpush2.bf16.msra.mxu0 0
    %1893 = vmatprep.subr.bf16.mxu0 0
    %1894 = vmatpush2.bf16.msra.mxu0 0
    %1895 = vmatprep.subr.bf16.mxu0 0
    %1896 = vmatpush2.bf16.msra.mxu0 0
    %1897 = vmatprep.subr.bf16.mxu0 0
    %1898 = vmatpush2.bf16.msra.mxu0 0
    %1899 = vmatprep.subr.bf16.mxu0 0
    %1900 = vmatpush2.bf16.msra.mxu0 0
    %1901 = vmatprep.subr.bf16.mxu0 0
    %1902 = vmatpush2.bf16.msra.mxu0 0
    %1903 = vmatprep.subr.bf16.mxu0 0
    %1904 = vmatpush2.bf16.msra.mxu0 0
    %1905 = vmatprep.mubr.bf16.mxu0 0
    %1906 = vmatmul.mubr.bf16.gmra.mxu0 %v1801
    %v1907 = vpop.f32.mrf.mxu0
    %v1908 = vadd.f32 0.0, %v1907
    %v1909 = vpop.f32.mrf.mxu0
    %v1910 = vpop.f32.mrf.mxu0
    %v1911 = vpop.f32.mrf.mxu0
    %1912 = vdwg.mxu0
    %v1913 = vrot.slane %v1672, 7
    %v1914 = vrot.slane %v1673, 6
    %v1915 = vsel %vm170, %v1914, %v1913
    %v1916 = vpack.c.b16 %v1915, %v1915
    %v1918 = vsel %vm117, %v1916, 0
    %1920 = vmatprep.subr.bf16.mxu0 0
    %1921 = vmatpush1.bf16.msra.mxu0 0
    %1922 = vmatprep.subr.bf16.mxu0 0
    %1923 = vmatpush1.bf16.msra.mxu0 0
    %1924 = vmatprep.subr.bf16.mxu0 0
    %1925 = vmatpush1.bf16.msra.mxu0 0
    %1926 = vmatprep.subr.bf16.mxu0 0
    %1927 = vmatpush1.bf16.msra.mxu0 0
    %1928 = vmatprep.subr.bf16.mxu0 0
    %1929 = vmatpush1.bf16.msra.mxu0 0
    %1930 = vmatprep.subr.bf16.mxu0 0
    %1931 = vmatpush1.bf16.msra.mxu0 0
    %1932 = vmatprep.subr.bf16.mxu0 0
    %1933 = vmatpush1.bf16.msra.mxu0 %v182
    %1934 = vmatprep.subr.bf16.mxu0 0
    %1935 = vmatpush1.bf16.msra.mxu0 %v181
    %1936 = vmatprep.subr.bf16.mxu0 0
    %1937 = vmatpush2.bf16.msra.mxu0 0
    %1938 = vmatprep.subr.bf16.mxu0 0
    %1939 = vmatpush2.bf16.msra.mxu0 0
    %1940 = vmatprep.subr.bf16.mxu0 0
    %1941 = vmatpush2.bf16.msra.mxu0 0
    %1942 = vmatprep.subr.bf16.mxu0 0
    %1943 = vmatpush2.bf16.msra.mxu0 0
    %1944 = vmatprep.subr.bf16.mxu0 0
    %1945 = vmatpush2.bf16.msra.mxu0 0
    %1946 = vmatprep.subr.bf16.mxu0 0
    %1947 = vmatpush2.bf16.msra.mxu0 0
    %1948 = vmatprep.subr.bf16.mxu0 0
    %1949 = vmatpush2.bf16.msra.mxu0 0
    %1950 = vmatprep.subr.bf16.mxu0 0
    %1951 = vmatpush2.bf16.msra.mxu0 0
    %1952 = vmatprep.mubr.bf16.mxu0 0
    %1953 = vmatmul.mubr.bf16.gmra.mxu0 %v1918
    %v1954 = vpop.f32.mrf.mxu0
    %v1955 = vadd.f32 %v1908, %v1954
    %v1956 = vpop.f32.mrf.mxu0
    %v1957 = vpop.f32.mrf.mxu0
    %v1958 = vpop.f32.mrf.mxu0
    %1959 = vdwg.mxu0
    %v1960 = vadd.f32 %v1955, %v232
    %v1961 = vmul.f32 %v1960, 2.0
    %v1962 = vsel %vm102, %v1961, %v1960
    %v1963 = vxor.u32 %v1962, 2147483648
    %v1964 = vmul.f32 %v1963, 1.442695
    %v1965 = vpow.pop %v1964
    %v1966 = vadd.f32 %v1965, 1.0
    %v1967 = vrcp.pop %v1966
    %v1968 = vmul.f32 1.0, %v1967
    %v1969 = vmul.f32 %v1968, 2.0
    %v1970 = vsub.f32 %v1969, 1.0
    %v1971 = vsel %vm102, %v1970, %v1968
    %v1972 = vmul.f32 %v1971, %v1743
    %1974 = vrot.lane.b32.xlu0 %v1971, 64
    %v1975 = vpop.permute.xlu0 %1974
    %v1977 = vmul.f32 %v1971, %v1975
    %1979 = vrot.lane.b32.xlu0 %v1977, 32
    %v1980 = vpop.permute.xlu0 %1979
    %v1982 = vadd.f32 %v1972, %v1980
    %v1983 = vtanh.pop %v1982
    %1985 = vrot.lane.b32.xlu0 %v1983, 64
    %v1986 = vpop.permute.xlu0 %1985
    %v1988 = vmul.f32 %v1971, %v1986
    %v1989 = vpack.c.bf16 %v1988, %v1988
    %1991 = vrot.lane.b32.xlu0 %v1872, 32
    %v1992 = vpop.permute.xlu0 %1991
    %v1994 = vsel %vm117, %v1992, 0
    %1996 = vmatprep.subr.bf16.mxu0 0
    %1997 = vmatpush1.bf16.msra.mxu0 0
    %1998 = vmatprep.subr.bf16.mxu0 0
    %1999 = vmatpush1.bf16.msra.mxu0 0
    %2000 = vmatprep.subr.bf16.mxu0 0
    %2001 = vmatpush1.bf16.msra.mxu0 0
    %2002 = vmatprep.subr.bf16.mxu0 0
    %2003 = vmatpush1.bf16.msra.mxu0 0
    %2004 = vmatprep.subr.bf16.mxu0 0
    %2005 = vmatpush1.bf16.msra.mxu0 0
    %2006 = vmatprep.subr.bf16.mxu0 0
    %2007 = vmatpush1.bf16.msra.mxu0 0
    %2008 = vmatprep.subr.bf16.mxu0 0
    %2009 = vmatpush1.bf16.msra.mxu0 %v273
    %2010 = vmatprep.subr.bf16.mxu0 0
    %2011 = vmatpush1.bf16.msra.mxu0 %v272
    %2012 = vmatprep.subr.bf16.mxu0 0
    %2013 = vmatpush2.bf16.msra.mxu0 0
    %2014 = vmatprep.subr.bf16.mxu0 0
    %2015 = vmatpush2.bf16.msra.mxu0 0
    %2016 = vmatprep.subr.bf16.mxu0 0
    %2017 = vmatpush2.bf16.msra.mxu0 0
    %2018 = vmatprep.subr.bf16.mxu0 0
    %2019 = vmatpush2.bf16.msra.mxu0 0
    %2020 = vmatprep.subr.bf16.mxu0 0
    %2021 = vmatpush2.bf16.msra.mxu0 0
    %2022 = vmatprep.subr.bf16.mxu0 0
    %2023 = vmatpush2.bf16.msra.mxu0 0
    %2024 = vmatprep.subr.bf16.mxu0 0
    %2025 = vmatpush2.bf16.msra.mxu0 0
    %2026 = vmatprep.subr.bf16.mxu0 0
    %2027 = vmatpush2.bf16.msra.mxu0 0
    %2028 = vmatprep.mubr.bf16.mxu0 0
    %2029 = vmatmul.mubr.bf16.gmra.mxu0 %v1994
    %v2030 = vpop.f32.mrf.mxu0
    %v2031 = vadd.f32 0.0, %v2030
    %v2032 = vpop.f32.mrf.mxu0
    %v2033 = vpop.f32.mrf.mxu0
    %v2034 = vpop.f32.mrf.mxu0
    %2035 = vdwg.mxu0
    %2037 = vrot.lane.b32.xlu0 %v1989, 32
    %v2038 = vpop.permute.xlu0 %2037
    %v2040 = vsel %vm117, %v2038, 0
    %2042 = vmatprep.subr.bf16.mxu0 0
    %2043 = vmatpush1.bf16.msra.mxu0 0
    %2044 = vmatprep.subr.bf16.mxu0 0
    %2045 = vmatpush1.bf16.msra.mxu0 0
    %2046 = vmatprep.subr.bf16.mxu0 0
    %2047 = vmatpush1.bf16.msra.mxu0 0
    %2048 = vmatprep.subr.bf16.mxu0 0
    %2049 = vmatpush1.bf16.msra.mxu0 0
    %2050 = vmatprep.subr.bf16.mxu0 0
    %2051 = vmatpush1.bf16.msra.mxu0 0
    %2052 = vmatprep.subr.bf16.mxu0 0
    %2053 = vmatpush1.bf16.msra.mxu0 0
    %2054 = vmatprep.subr.bf16.mxu0 0
    %2055 = vmatpush1.bf16.msra.mxu0 %v328
    %2056 = vmatprep.subr.bf16.mxu0 0
    %2057 = vmatpush1.bf16.msra.mxu0 %v327
    %2058 = vmatprep.subr.bf16.mxu0 0
    %2059 = vmatpush2.bf16.msra.mxu0 0
    %2060 = vmatprep.subr.bf16.mxu0 0
    %2061 = vmatpush2.bf16.msra.mxu0 0
    %2062 = vmatprep.subr.bf16.mxu0 0
    %2063 = vmatpush2.bf16.msra.mxu0 0
    %2064 = vmatprep.subr.bf16.mxu0 0
    %2065 = vmatpush2.bf16.msra.mxu0 0
    %2066 = vmatprep.subr.bf16.mxu0 0
    %2067 = vmatpush2.bf16.msra.mxu0 0
    %2068 = vmatprep.subr.bf16.mxu0 0
    %2069 = vmatpush2.bf16.msra.mxu0 0
    %2070 = vmatprep.subr.bf16.mxu0 0
    %2071 = vmatpush2.bf16.msra.mxu0 0
    %2072 = vmatprep.subr.bf16.mxu0 0
    %2073 = vmatpush2.bf16.msra.mxu0 0
    %2074 = vmatprep.mubr.bf16.mxu0 0
    %2075 = vmatmul.mubr.bf16.gmra.mxu0 %v2040
    %v2076 = vpop.f32.mrf.mxu0
    %v2077 = vadd.f32 %v2031, %v2076
    %v2078 = vpop.f32.mrf.mxu0
    %v2079 = vpop.f32.mrf.mxu0
    %v2080 = vpop.f32.mrf.mxu0
    %2081 = vdwg.mxu0
    %v2082 = vadd.f32 %v2077, %v378
    %v2083 = vmul.f32 %v2082, 2.0
    %v2084 = vsel %vm102, %v2083, %v2082
    %v2085 = vxor.u32 %v2084, 2147483648
    %v2086 = vmul.f32 %v2085, 1.442695
    %v2087 = vpow.pop %v2086
    %v2088 = vadd.f32 %v2087, 1.0
    %v2089 = vrcp.pop %v2088
    %v2090 = vmul.f32 1.0, %v2089
    %v2091 = vmul.f32 %v2090, 2.0
    %v2092 = vsub.f32 %v2091, 1.0
    %v2093 = vsel %vm102, %v2092, %v2090
    %v2094 = vmul.f32 %v2093, %v1865
    %2096 = vrot.lane.b32.xlu0 %v2093, 64
    %v2097 = vpop.permute.xlu0 %2096
    %v2099 = vmul.f32 %v2093, %v2097
    %2101 = vrot.lane.b32.xlu0 %v2099, 32
    %v2102 = vpop.permute.xlu0 %2101
    %v2104 = vadd.f32 %v2094, %v2102
    %v2105 = vtanh.pop %v2104
    %2107 = vrot.lane.b32.xlu0 %v2105, 64
    %v2108 = vpop.permute.xlu0 %2107
    %v2110 = vmul.f32 %v2093, %v2108
    %v2111 = vpack.c.bf16 %v2110, %v2110
    %v2113 = vlaneseq
    %v2114 = vshrl.u32 %v2113, 7
    %v2115 = vsub.s32 0, %v2114
    %v2116 = vrot.slane %v97, %v2115
    %2119 = vrot.lane.b32.xlu0 %v2111, 32
    %v2120 = vpop.permute.xlu0 %2119
    %v2125 = vunpack.c.l.b16 %v93
    %v2126 = vunpack.c.l.b16 %v94
    %v2127 = vunpack.c.l.b16 %v95
    %v2128 = vunpack.c.l.b16 %v96
    %v2129 = vpack.c.b16 %v2126, %v2125
    %v2130 = vpack.c.b16 %v2128, %v2127
    %v2134 = vsel %vm117, %v2120, 0
    %2136 = vmatprep.subr.bf16.mxu0 0
    %2137 = vmatpush1.bf16.msra.mxu0 0
    %2138 = vmatprep.subr.bf16.mxu0 0
    %2139 = vmatpush1.bf16.msra.mxu0 0
    %2140 = vmatprep.subr.bf16.mxu0 0
    %2141 = vmatpush1.bf16.msra.mxu0 0
    %2142 = vmatprep.subr.bf16.mxu0 0
    %2143 = vmatpush1.bf16.msra.mxu0 0
    %2144 = vmatprep.subr.bf16.mxu0 0
    %2145 = vmatpush1.bf16.msra.mxu0 0
    %2146 = vmatprep.subr.bf16.mxu0 0
    %2147 = vmatpush1.bf16.msra.mxu0 0
    %2148 = vmatprep.subr.bf16.mxu0 0
    %2149 = vmatpush1.bf16.msra.mxu0 %v2130
    %2150 = vmatprep.subr.bf16.mxu0 0
    %2151 = vmatpush1.bf16.msra.mxu0 %v2129
    %2152 = vmatprep.subr.bf16.mxu0 0
    %2153 = vmatpush2.bf16.msra.mxu0 0
    %2154 = vmatprep.subr.bf16.mxu0 0
    %2155 = vmatpush2.bf16.msra.mxu0 0
    %2156 = vmatprep.subr.bf16.mxu0 0
    %2157 = vmatpush2.bf16.msra.mxu0 0
    %2158 = vmatprep.subr.bf16.mxu0 0
    %2159 = vmatpush2.bf16.msra.mxu0 0
    %2160 = vmatprep.subr.bf16.mxu0 0
    %2161 = vmatpush2.bf16.msra.mxu0 0
    %2162 = vmatprep.subr.bf16.mxu0 0
    %2163 = vmatpush2.bf16.msra.mxu0 0
    %2164 = vmatprep.subr.bf16.mxu0 0
    %2165 = vmatpush2.bf16.msra.mxu0 0
    %2166 = vmatprep.subr.bf16.mxu0 0
    %2167 = vmatpush2.bf16.msra.mxu0 0
    %2168 = vmatprep.mubr.bf16.mxu0 0
    %2169 = vmatmul.mubr.bf16.gmra.mxu0 %v2134
    %v2170 = vpop.f32.mrf.mxu0
    %v2171 = vadd.f32 %v2116, %v2170
    %v2172 = vpop.f32.mrf.mxu0
    %v2173 = vpop.f32.mrf.mxu0
    %v2174 = vpop.f32.mrf.mxu0
    %2175 = vdwg.mxu0
    %v2176 = vmul.f32 %v2171, %v2171
    %vm2177 = vcmask 123904
    %v2178 = vsel %vm2177, %v2176, 0.0
    %2179 = vadd.xlane.f32.xlu0 %v2178
    %v2180 = vpop.xlane.xlu0 %2179
    %v2181 = vadd.f32 %v2180, 1e-12
    %v2182 = vrsqrt.pop %v2181
    %v2183 = vmul.f32 %v2171, %v2182
    %2184 = vst.msk [vmem:[#allocation8] sm:$0x3] %vm2177, %v2183
    // Predicated region
    $region50: #{tpu_custom_call.1} parent=1 // pred_check
      _
    $region51: #{tpu_custom_call.1} parent=1 // pred_check_branch
      %2186 = sbr.rel (0) target = $region53
    $region52: #{tpu_custom_call.1} parent=1 // pred_region
      %s2188 = ssub.s32 32, 32
      %2189 = vsyncadd [#allocation4], %s2188
      %s2191 = sshll.u32 [#allocation8], 4
      %s2192 = int_to_ptr.vmem [resolvable:$true] %s2191
      %2194 = dma.vmem_to_hbm [thread:$0]  %s2192, 32, %s9, [#allocation4]
    $region53: #{tpu_custom_call.1} parent=1 // pred_fallthru
      _
    // Predicated region
    $region54: #{tpu_custom_call.1} parent=1 // pred_check
      _
    $region55: #{tpu_custom_call.1} parent=1 // pred_check_branch
      %2196 = sbr.rel (0) target = $region57
    $region56: #{tpu_custom_call.1} parent=1 // pred_region
      %2197 = dma.done [#allocation4], 32
    $region57: #{tpu_custom_call.1} parent=1 // pred_fallthru
      _
    %2198 = vsyncpa [#allocation3], 1
    %2199 = vsyncpa [#allocation6], 1
    %2200 = vsyncpa [#allocation4], 1

</llo_original>
